<compile_context>
chip_gen: v5e
topology: v5e:2x2
jax: 0.10.0
libtpu: 0.0.40
codegen_flags: <defaults>
</compile_context>

<pallas_src>
import math

import jax
import jax.numpy as jnp
from jax.experimental import pallas as pl
from jax.experimental.pallas import tpu as pltpu


# ----------------------------------------------------------------------------
# helpers
# ----------------------------------------------------------------------------
def _round_up(x, m):
    return ((x + m - 1) // m) * m


def _vmem_limit_bytes():
    """Generation-dependent VMEM scoped limit (~3/4 of physical capacity)."""
    cap = 64 * 1024 * 1024  # conservative default (v7x per-TC physical VMEM)
    try:
        info = pltpu.get_tpu_info()
        cap = int(getattr(info, "vmem_capacity_bytes", cap) or cap)
    except Exception:
        pass
    return min((cap * 3) // 4, 112 * 1024 * 1024)


def _pad_and_tiles(n):
    """Padded node count + row/k tiles that evenly divide it (never forced to 128)."""
    n_p = _round_up(n, 128)
    if n_p <= 512:
        tm = n_p            # single row tile for small graphs
        tk = n_p            # single k step
    else:
        n_p = _round_up(n_p, 512)    # pad up instead of dropping to 128-tiles
        tm = 512                     # >=2 row tiles whenever n_p > 512 (megacore)
        tk = 1024 if n_p % 1024 == 0 else 512
    return n_p, tm, tk


def _pad_feature(f):
    f_p = _round_up(f, 128)
    if f_p > 1024:
        f_p = _round_up(f_p, 512)
    return f_p


# ----------------------------------------------------------------------------
# Kernel 1: support precompute  support_ext = x @ [W | W_self]   (bf16 out)
# Fully tiled (i, j, k) with an f32 scratch accumulator (large-feature safe).
# ----------------------------------------------------------------------------
def _support_kernel(x_ref, w_ref, o_ref, acc_ref):
    @pl.when(pl.program_id(2) == 0)
    def _init():
        acc_ref[...] = jnp.zeros_like(acc_ref)

    acc_ref[...] += jnp.dot(x_ref[...].astype(jnp.bfloat16), w_ref[...],
                            preferred_element_type=jnp.float32)

    @pl.when(pl.program_id(2) == pl.num_programs(2) - 1)
    def _store():
        o_ref[...] = acc_ref[...].astype(o_ref.dtype)


def _support_matmul(x_p, w_ext_bf, *, tm, vmem_limit):
    n_p, in_f_p = x_p.shape
    two_out = w_ext_bf.shape[1]

    tk = in_f_p if in_f_p <= 1024 else (1024 if in_f_p % 1024 == 0 else 512)
    if two_out <= 1024:
        tn = two_out
    elif two_out % 1024 == 0:
        tn = 1024
    elif two_out % 512 == 0:
        tn = 512
    else:
        tn = 256

    grid = (n_p // tm, two_out // tn, in_f_p // tk)
    return pl.pallas_call(
        _support_kernel,
        out_shape=jax.ShapeDtypeStruct((n_p, two_out), jnp.bfloat16),
        grid_spec=pltpu.PrefetchScalarGridSpec(
            num_scalar_prefetch=0,
            grid=grid,
            in_specs=[
                pl.BlockSpec((tm, tk), lambda i, j, k: (i, k)),
                pl.BlockSpec((tk, tn), lambda i, j, k: (k, j)),
            ],
            out_specs=pl.BlockSpec((tm, tn), lambda i, j, k: (i, j)),
            scratch_shapes=[pltpu.VMEM((tm, tn), jnp.float32)],
        ),
        compiler_params=pltpu.CompilerParams(
            dimension_semantics=("parallel", "parallel", "arbitrary"),
            vmem_limit_bytes=vmem_limit),
    )(x_p, w_ext_bf)


# ----------------------------------------------------------------------------
# Kernel 2: aggregation + fused BN-stats epilogue
#   out[i] = sum_k adj[i,k] @ support[k]  +  self_term[i]
#   at last k: emit per-row-tile per-feature sum and sum-of-squares.
# support may be fully VMEM-resident (sliced with pl.ds) or per-k tiled.
# adj tile is cast to bf16 in-kernel (handles f32 no-pad fast path).
# ----------------------------------------------------------------------------
def _make_gcn_kernel(support_resident):
    def kernel(adj_ref, sup_ref, selft_ref, o_ref, sum_ref, sq_ref):
        k = pl.program_id(1)

        @pl.when(k == 0)
        def _init():
            o_ref[...] = selft_ref[...].astype(jnp.float32)

        if support_resident:
            tk = adj_ref.shape[1]
            start = pl.multiple_of(k * tk, tk)
            sup = sup_ref[pl.ds(start, tk), :]
        else:
            sup = sup_ref[...]

        o_ref[...] += jnp.dot(adj_ref[...].astype(jnp.bfloat16), sup,
                              preferred_element_type=jnp.float32)

        @pl.when(k == pl.num_programs(1) - 1)
        def _stats():
            t = o_ref[...]
            sum_ref[...] = jnp.sum(t, axis=0, keepdims=True)[None]
            sq_ref[...] = jnp.sum(t * t, axis=0, keepdims=True)[None]

    return kernel


def _aggregate(adj_in, support_ext, out_f_p, *, tm, tk, vmem_limit):
    n_p = adj_in.shape[0]
    n_i = n_p // tm
    n_k = n_p // tk

    # Fully resident support half (read from HBM exactly once per launch) when
    # it fits comfortably in VMEM alongside the other blocks.
    resident_budget = max(8 * 1024 * 1024, vmem_limit // 6)
    support_resident = (2 * n_p * out_f_p * 2) <= resident_budget  # 2 bufs, bf16
    if support_resident:
        sup_spec = pl.BlockSpec((n_p, out_f_p), lambda i, k: (0, 0))
    else:
        sup_spec = pl.BlockSpec((tk, out_f_p), lambda i, k: (k, 0))

    flops = 2 * n_p * n_p * out_f_p
    bytes_accessed = (int(adj_in.size) * adj_in.dtype.itemsize
                      + n_p * out_f_p * 2        # support half (once if resident)
                      + n_p * out_f_p * 2        # self-loop half
                      + n_p * out_f_p * 4)       # f32 pre-BN output

    return pl.pallas_call(
        _make_gcn_kernel(support_resident),
        out_shape=(
            jax.ShapeDtypeStruct((n_p, out_f_p), jnp.float32),     # pre-BN output
            jax.ShapeDtypeStruct((n_i, 1, out_f_p), jnp.float32),  # partial sums
            jax.ShapeDtypeStruct((n_i, 1, out_f_p), jnp.float32),  # partial sum sq
        ),
        grid_spec=pltpu.PrefetchScalarGridSpec(
            num_scalar_prefetch=0,
            grid=(n_i, n_k),
            in_specs=[
                pl.BlockSpec((tm, tk), lambda i, k: (i, k)),        # adj tile
                sup_spec,                                           # support half
                pl.BlockSpec((tm, out_f_p), lambda i, k: (i, 1)),   # self-term half
            ],
            out_specs=(
                pl.BlockSpec((tm, out_f_p), lambda i, k: (i, 0)),
                pl.BlockSpec((1, 1, out_f_p), lambda i, k: (i, 0, 0)),
                pl.BlockSpec((1, 1, out_f_p), lambda i, k: (i, 0, 0)),
            ),
        ),
        compiler_params=pltpu.CompilerParams(
            dimension_semantics=("parallel", "arbitrary"),
            vmem_limit_bytes=vmem_limit),
        cost_estimate=pl.CostEstimate(flops=flops, transcendentals=0,
                                      bytes_accessed=bytes_accessed),
    )(adj_in, support_ext, support_ext)


# ----------------------------------------------------------------------------
# Kernel 3: apply batch-norm (precomputed scale/shift), in place, big row tiles
# ----------------------------------------------------------------------------
def _bn_apply_kernel(x_ref, scale_ref, shift_ref, o_ref):
    o_ref[...] = x_ref[...] * scale_ref[...] + shift_ref[...]


def _bn_row_tile(n_p, f_p):
    if n_p <= 512:
        return n_p
    # largest multiple-of-512 row tile dividing n_p, ~4 MiB f32 block cap
    cap_rows = max(512, ((4 * 1024 * 1024) // (4 * f_p)) // 512 * 512)
    t = min(n_p, 2048, cap_rows)
    while n_p % t:
        t -= 512
    return t


def _bn_apply(x, scale, shift, *, vmem_limit):
    n_p, f_p = x.shape
    tm = _bn_row_tile(n_p, f_p)
    return pl.pallas_call(
        _bn_apply_kernel,
        out_shape=jax.ShapeDtypeStruct((n_p, f_p), jnp.float32),
        grid_spec=pltpu.PrefetchScalarGridSpec(
            num_scalar_prefetch=0,
            grid=(n_p // tm,),
            in_specs=[
                pl.BlockSpec((tm, f_p), lambda i: (i, 0)),
                pl.BlockSpec((1, f_p), lambda i: (0, 0)),
                pl.BlockSpec((1, f_p), lambda i: (0, 0)),
            ],
            out_specs=pl.BlockSpec((tm, f_p), lambda i: (i, 0)),
        ),
        input_output_aliases={0: 0},     # normalize out_pre in place
        compiler_params=pltpu.CompilerParams(
            dimension_semantics=("parallel",),
            vmem_limit_bytes=vmem_limit),
    )(x, scale, shift)


# ----------------------------------------------------------------------------
# Module wrapper: GraphConvolutionBS.forward (defaults: withloop/withbn True,
# bias False, res False, sigma identity)
# ----------------------------------------------------------------------------
def graph_convolution_bs_forward(x, adj, params, eps=1e-5):
    n, in_f = x.shape
    out_f = params["weight"].shape[1]

    vmem_limit = _vmem_limit_bytes()

    n_p, tm, tk = _pad_and_tiles(n)
    in_f_p = _pad_feature(in_f)
    out_f_p = _pad_feature(out_f)

    # keep the per-step aggregation working set bounded for very wide outputs
    while tm > 256 and tm % 256 == 0 and tm * out_f_p * 12 > vmem_limit // 3:
        tm //= 2

    # x: pad only when needed (bf16 cast happens per tile inside the kernels)
    if (n_p, in_f_p) != (n, in_f):
        x_p = jnp.pad(x, ((0, n_p - n), (0, in_f_p - in_f)))
    else:
        x_p = x

    # adj: avoid the wrapper-side pad/cast round trip when no padding is needed;
    # the kernel casts f32 tiles to bf16 right before the MXU dot.
    if n_p != n:
        adj_in = jnp.pad(adj, ((0, n_p - n), (0, n_p - n))).astype(jnp.bfloat16)
    else:
        adj_in = adj

    # weight block: [W | W_self], zero-padded, bf16 (parameter-sized, cheap)
    w_ext = jnp.concatenate(
        [jnp.pad(params["weight"], ((0, in_f_p - in_f), (0, out_f_p - out_f))),
         jnp.pad(params["self_weight"], ((0, in_f_p - in_f), (0, out_f_p - out_f)))],
        axis=1).astype(jnp.bfloat16)                      # (in_f_p, 2*out_f_p)

    # pass 1: support_ext = x @ [W | W_self]   (computed once, reused for all i)
    support_ext = _support_matmul(x_p, w_ext, tm=tm, vmem_limit=vmem_limit)

    # pass 2: aggregation + fused BN-stats epilogue
    out_pre, sums, sqs = _aggregate(adj_in, support_ext, out_f_p,
                                    tm=tm, tk=tk, vmem_limit=vmem_limit)

    # tiny O(F) reduce for BN training-mode batch statistics (biased variance).
    # Padded rows/cols are exactly zero, so dividing by the true n is correct.
    mean = jnp.sum(sums, axis=0) / n                       # (1, out_f_p)
    var = jnp.sum(sqs, axis=0) / n - mean * mean
    var = jnp.maximum(var, 0.0)                            # guard cancellation
    # TODO(synk): BatchNorm1d running_mean/running_var momentum updates are not emitted.
    inv = jax.lax.rsqrt(var + eps)
    gamma = jnp.pad(params["bn_gamma"], (0, out_f_p - out_f),
                    constant_values=1.0)[None, :]
    beta = jnp.pad(params["bn_beta"], (0, out_f_p - out_f))[None, :]
    scale = gamma * inv
    shift = beta - mean * scale

    # pass 3: normalize in place (sigma = identity, res = False, bias = None)
    out = _bn_apply(out_pre, scale, shift, vmem_limit=vmem_limit)
    return out[:n, :out_f]


# ----------------------------------------------------------------------------
# Params / reference
# ----------------------------------------------------------------------------
def init_params(key, in_features, out_features):
    stdv = 1.0 / math.sqrt(out_features)
    k1, k2 = jax.random.split(key)
    weight = jax.random.uniform(k1, (in_features, out_features),
                                jnp.float32, -stdv, stdv)
    self_weight = jax.random.uniform(k2, (in_features, out_features),
                                     jnp.float32, -stdv, stdv)
    return {
        "weight": weight,
        "self_weight": self_weight,
        "bn_gamma": jnp.ones((out_features,), jnp.float32),
        "bn_beta": jnp.zeros((out_features,), jnp.float32),
    }


def reference_forward(x, adj, params):
    support = x @ params["weight"]
    out = adj @ support
    out = out + x @ params["self_weight"]
    mean = jnp.mean(out, axis=0, keepdims=True)
    var = jnp.mean((out - mean) ** 2, axis=0, keepdims=True)
    out = (out - mean) * jax.lax.rsqrt(var + 1e-5)
    out = out * params["bn_gamma"][None, :] + params["bn_beta"][None, :]
    return out


if __name__ == "__main__":
    N, IN_F, OUT_F = 256, 128, 128   # small graph: 256 nodes, 128 -> 128 features

    key = jax.random.PRNGKey(0)
    kx, ka, kp = jax.random.split(key, 3)
    x = jax.random.normal(kx, (N, IN_F), jnp.float32)
    # symmetric, row-normalized-ish dense adjacency (spmm treated as dense mm)
    a = jax.random.uniform(ka, (N, N), jnp.float32)
    adj = (a + a.T) / (2.0 * N)

    params = init_params(kp, IN_F, OUT_F)

    fwd = jax.jit(graph_convolution_bs_forward)
    out = fwd(x, adj, params)
    out = jax.block_until_ready(out)

    ref = reference_forward(x, adj, params)
    # loosened tolerance: kernel uses bf16 MXU operands with f32 accumulation
    assert jnp.allclose(out, ref, atol=5e-2, rtol=5e-2), "mismatch vs JAX reference"

    print("KERNEL_OK")
</pallas_src>

<mosaic_0001>
module attributes {stable_mosaic.version = 11 : i64} {
  func.func @_support_kernel(%arg0: i32, %arg1: i32, %arg2: i32, %arg3: memref<256x128xf32, #tpu.memory_space<vmem>>, %arg4: memref<128x256xbf16, #tpu.memory_space<vmem>>, %arg5: memref<256x256xbf16, #tpu.memory_space<vmem>>, %arg6: memref<256x256xf32, #tpu.memory_space<vmem>>) attributes {dimension_semantics = [#tpu.dimension_semantics<parallel>, #tpu.dimension_semantics<parallel>, #tpu.dimension_semantics<arbitrary>], iteration_bounds = array<i64: 1, 1, 1>, scalar_prefetch = 0 : i64, scratch_operands = 1 : i64, tpu.core_type = #tpu.core_type<tc>, window_params = [{transform_indices = @transform_0, window_bounds = array<i64: 256, 128>}, {transform_indices = @transform_1, window_bounds = array<i64: 128, 256>}, {transform_indices = @transform_2, window_bounds = array<i64: 256, 256>}]} {
    %c0_i32 = arith.constant 0 : i32
    %0 = arith.cmpi eq, %arg2, %c0_i32 : i32
    %1 = arith.extui %0 : i1 to i32
    %c0_i32_0 = arith.constant 0 : i32
    %2 = arith.cmpi ne, %1, %c0_i32_0 : i32
    scf.if %2 {
      %cst_10 = arith.constant 0.000000e+00 : f32
      %13 = vector.broadcast %cst_10 : f32 to vector<256x256xf32>
      %c0_11 = arith.constant 0 : index
      %c0_12 = arith.constant 0 : index
      %14 = vector.load %arg6[%c0_11, %c0_12] : memref<256x256xf32, #tpu.memory_space<vmem>>, vector<256x256xf32>
      tpu.vector_store %arg6[%c0_11, %c0_12], %13 {strides = array<i32>} : memref<256x256xf32, #tpu.memory_space<vmem>>, vector<256x256xf32>,
    } else {
    }
    %c0 = arith.constant 0 : index
    %c0_1 = arith.constant 0 : index
    %3 = vector.load %arg6[%c0, %c0_1] : memref<256x256xf32, #tpu.memory_space<vmem>>, vector<256x256xf32>
    %c0_2 = arith.constant 0 : index
    %c0_3 = arith.constant 0 : index
    %4 = vector.load %arg3[%c0_2, %c0_3] : memref<256x128xf32, #tpu.memory_space<vmem>>, vector<256x128xf32>
    %5 = arith.truncf %4 : vector<256x128xf32> to vector<256x128xbf16>
    %c0_4 = arith.constant 0 : index
    %c0_5 = arith.constant 0 : index
    %6 = vector.load %arg4[%c0_4, %c0_5] : memref<128x256xbf16, #tpu.memory_space<vmem>>, vector<128x256xbf16>
    %cst = arith.constant dense<0.000000e+00> : vector<256x256xf32>
    %7 = tpu.matmul %5, %6, %cst {dimension_numbers = #tpu.dot_dimension_numbers<[1], [0], [0], [1], [0, 0, 1, 1], [], []>} : vector<256x128xbf16>, vector<128x256xbf16>, vector<256x256xf32> -> vector<256x256xf32>
    %8 = arith.addf %3, %7 : vector<256x256xf32>
    %c0_6 = arith.constant 0 : index
    %c0_7 = arith.constant 0 : index
    %9 = vector.load %arg6[%c0_6, %c0_7] : memref<256x256xf32, #tpu.memory_space<vmem>>, vector<256x256xf32>
    tpu.vector_store %arg6[%c0_6, %c0_7], %8 {strides = array<i32>} : memref<256x256xf32, #tpu.memory_space<vmem>>, vector<256x256xf32>,
    %c0_i32_8 = arith.constant 0 : i32
    %10 = arith.cmpi eq, %arg2, %c0_i32_8 : i32
    %11 = arith.extui %10 : i1 to i32
    %c0_i32_9 = arith.constant 0 : i32
    %12 = arith.cmpi ne, %11, %c0_i32_9 : i32
    scf.if %12 {
      %c0_10 = arith.constant 0 : index
      %c0_11 = arith.constant 0 : index
      %13 = vector.load %arg6[%c0_10, %c0_11] : memref<256x256xf32, #tpu.memory_space<vmem>>, vector<256x256xf32>
      %14 = arith.truncf %13 : vector<256x256xf32> to vector<256x256xbf16>
      %c0_12 = arith.constant 0 : index
      %c0_13 = arith.constant 0 : index
      %15 = vector.load %arg5[%c0_12, %c0_13] : memref<256x256xbf16, #tpu.memory_space<vmem>>, vector<256x256xbf16>
      tpu.vector_store %arg5[%c0_12, %c0_13], %14 {strides = array<i32>} : memref<256x256xbf16, #tpu.memory_space<vmem>>, vector<256x256xbf16>,
    } else {
    }
    return
  }
  func.func @transform_0(%arg0: i32, %arg1: i32, %arg2: i32) -> (i32, i32) {
    %c0_i32 = arith.constant 0 : i32
    return %arg0, %arg2 : i32, i32
  }
  func.func @transform_1(%arg0: i32, %arg1: i32, %arg2: i32) -> (i32, i32) {
    %c0_i32 = arith.constant 0 : i32
    return %arg2, %arg1 : i32, i32
  }
  func.func @transform_2(%arg0: i32, %arg1: i32, %arg2: i32) -> (i32, i32) {
    %c0_i32 = arith.constant 0 : i32
    return %arg0, %arg1 : i32, i32
  }
}

module attributes {stable_mosaic.version = 11 : i64} {
  func.func @_bn_apply_kernel(%arg0: i32, %arg1: memref<256x128xf32, #tpu.memory_space<vmem>>, %arg2: memref<1x128xf32, #tpu.memory_space<vmem>>, %arg3: memref<1x128xf32, #tpu.memory_space<vmem>>, %arg4: memref<256x128xf32, #tpu.memory_space<vmem>>) attributes {dimension_semantics = [#tpu.dimension_semantics<parallel>], iteration_bounds = array<i64: 1>, scalar_prefetch = 0 : i64, scratch_operands = 0 : i64, tpu.core_type = #tpu.core_type<tc>, window_params = [{transform_indices = @transform_0, window_bounds = array<i64: 256, 128>}, {pipeline_mode = #tpu.pipeline_mode<synchronous>, transform_indices = @transform_1, window_bounds = array<i64: 1, 128>}, {pipeline_mode = #tpu.pipeline_mode<synchronous>, transform_indices = @transform_2, window_bounds = array<i64: 1, 128>}, {transform_indices = @transform_3, window_bounds = array<i64: 256, 128>}]} {
    %c0 = arith.constant 0 : index
    %c0_0 = arith.constant 0 : index
    %0 = vector.load %arg1[%c0, %c0_0] : memref<256x128xf32, #tpu.memory_space<vmem>>, vector<256x128xf32>
    %c0_1 = arith.constant 0 : index
    %c0_2 = arith.constant 0 : index
    %1 = vector.load %arg2[%c0_1, %c0_2] : memref<1x128xf32, #tpu.memory_space<vmem>>, vector<1x128xf32>
    %2 = vector.broadcast %1 : vector<1x128xf32> to vector<256x128xf32>
    %3 = arith.mulf %0, %2 : vector<256x128xf32>
    %c0_3 = arith.constant 0 : index
    %c0_4 = arith.constant 0 : index
    %4 = vector.load %arg3[%c0_3, %c0_4] : memref<1x128xf32, #tpu.memory_space<vmem>>, vector<1x128xf32>
    %5 = vector.broadcast %4 : vector<1x128xf32> to vector<256x128xf32>
    %6 = arith.addf %3, %5 : vector<256x128xf32>
    %c0_5 = arith.constant 0 : index
    %c0_6 = arith.constant 0 : index
    %7 = vector.load %arg4[%c0_5, %c0_6] : memref<256x128xf32, #tpu.memory_space<vmem>>, vector<256x128xf32>
    tpu.vector_store %arg4[%c0_5, %c0_6], %6 {strides = array<i32>} : memref<256x128xf32, #tpu.memory_space<vmem>>, vector<256x128xf32>,
    return
  }
  func.func @transform_0(%arg0: i32) -> (i32, i32) {
    %c0_i32 = arith.constant 0 : i32
    %c0_i32_0 = arith.constant 0 : i32
    return %arg0, %c0_i32 : i32, i32
  }
  func.func @transform_1(%arg0: i32) -> (i32, i32) {
    %c0_i32 = arith.constant 0 : i32
    %c0_i32_0 = arith.constant 0 : i32
    %c0_i32_1 = arith.constant 0 : i32
    return %c0_i32, %c0_i32_0 : i32, i32
  }
  func.func @transform_2(%arg0: i32) -> (i32, i32) {
    %c0_i32 = arith.constant 0 : i32
    %c0_i32_0 = arith.constant 0 : i32
    %c0_i32_1 = arith.constant 0 : i32
    return %c0_i32, %c0_i32_0 : i32, i32
  }
  func.func @transform_3(%arg0: i32) -> (i32, i32) {
    %c0_i32 = arith.constant 0 : i32
    %c0_i32_0 = arith.constant 0 : i32
    return %arg0, %c0_i32 : i32, i32
  }
}

module attributes {stable_mosaic.version = 11 : i64} {
  func.func @kernel(%arg0: i32, %arg1: i32, %arg2: memref<256x256xf32, #tpu.memory_space<vmem>>, %arg3: memref<256x128xbf16, #tpu.memory_space<vmem>>, %arg4: memref<256x128xbf16, #tpu.memory_space<vmem>>, %arg5: memref<256x128xf32, #tpu.memory_space<vmem>>, %arg6: memref<1x1x128xf32, #tpu.memory_space<vmem>>, %arg7: memref<1x1x128xf32, #tpu.memory_space<vmem>>) attributes {dimension_semantics = [#tpu.dimension_semantics<parallel>, #tpu.dimension_semantics<arbitrary>], iteration_bounds = array<i64: 1, 1>, scalar_prefetch = 0 : i64, scratch_operands = 0 : i64, tpu.core_type = #tpu.core_type<tc>, window_params = [{transform_indices = @transform_0, window_bounds = array<i64: 256, 256>}, {transform_indices = @transform_1, window_bounds = array<i64: 256, 128>}, {transform_indices = @transform_2, window_bounds = array<i64: 256, 128>}, {transform_indices = @transform_3, window_bounds = array<i64: 256, 128>}, {transform_indices = @transform_4, window_bounds = array<i64: 1, 1, 128>}, {transform_indices = @transform_5, window_bounds = array<i64: 1, 1, 128>}]} {
    %c0_i32 = arith.constant 0 : i32
    %0 = arith.cmpi eq, %arg1, %c0_i32 : i32
    %1 = arith.extui %0 : i1 to i32
    %c0_i32_0 = arith.constant 0 : i32
    %2 = arith.cmpi ne, %1, %c0_i32_0 : i32
    scf.if %2 {
      %c0_9 = arith.constant 0 : index
      %c0_10 = arith.constant 0 : index
      %16 = vector.load %arg4[%c0_9, %c0_10] : memref<256x128xbf16, #tpu.memory_space<vmem>>, vector<256x128xbf16>
      %17 = arith.extf %16 : vector<256x128xbf16> to vector<256x128xf32>
      %c0_11 = arith.constant 0 : index
      %c0_12 = arith.constant 0 : index
      %18 = vector.load %arg5[%c0_11, %c0_12] : memref<256x128xf32, #tpu.memory_space<vmem>>, vector<256x128xf32>
      tpu.vector_store %arg5[%c0_11, %c0_12], %17 {strides = array<i32>} : memref<256x128xf32, #tpu.memory_space<vmem>>, vector<256x128xf32>,
    } else {
    }
    %c256_i32 = arith.constant 256 : i32
    %3 = arith.muli %arg1, %c256_i32 : i32
    %4 = tpu.assume_multiple %3, 256 : i32
    %5 = arith.index_cast %4 : i32 to index
    %c0 = arith.constant 0 : index
    %6 = vector.load %arg3[%5, %c0] : memref<256x128xbf16, #tpu.memory_space<vmem>>, vector<256x128xbf16>
    %c0_1 = arith.constant 0 : index
    %c0_2 = arith.constant 0 : index
    %7 = vector.load %arg5[%c0_1, %c0_2] : memref<256x128xf32, #tpu.memory_space<vmem>>, vector<256x128xf32>
    %c0_3 = arith.constant 0 : index
    %c0_4 = arith.constant 0 : index
    %8 = vector.load %arg2[%c0_3, %c0_4] : memref<256x256xf32, #tpu.memory_space<vmem>>, vector<256x256xf32>
    %9 = arith.truncf %8 : vector<256x256xf32> to vector<256x256xbf16>
    %cst = arith.constant dense<0.000000e+00> : vector<256x128xf32>
    %10 = tpu.matmul %9, %6, %cst {dimension_numbers = #tpu.dot_dimension_numbers<[1], [0], [0], [1], [0, 0, 1, 1], [], []>} : vector<256x256xbf16>, vector<256x128xbf16>, vector<256x128xf32> -> vector<256x128xf32>
    %11 = arith.addf %7, %10 : vector<256x128xf32>
    %c0_5 = arith.constant 0 : index
    %c0_6 = arith.constant 0 : index
    %12 = vector.load %arg5[%c0_5, %c0_6] : memref<256x128xf32, #tpu.memory_space<vmem>>, vector<256x128xf32>
    tpu.vector_store %arg5[%c0_5, %c0_6], %11 {strides = array<i32>} : memref<256x128xf32, #tpu.memory_space<vmem>>, vector<256x128xf32>,
    %c0_i32_7 = arith.constant 0 : i32
    %13 = arith.cmpi eq, %arg1, %c0_i32_7 : i32
    %14 = arith.extui %13 : i1 to i32
    %c0_i32_8 = arith.constant 0 : i32
    %15 = arith.cmpi ne, %14, %c0_i32_8 : i32
    scf.if %15 {
      %c0_9 = arith.constant 0 : index
      %c0_10 = arith.constant 0 : index
      %16 = vector.load %arg5[%c0_9, %c0_10] : memref<256x128xf32, #tpu.memory_space<vmem>>, vector<256x128xf32>
      %cst_11 = arith.constant dense<0.000000e+00> : vector<128xf32>
      %17 = vector.multi_reduction <add>, %16, %cst_11 [0] : vector<256x128xf32> to vector<128xf32>
      %18 = vector.shape_cast %17 : vector<128xf32> to vector<1x128xf32>
      %19 = vector.shape_cast %18 : vector<1x128xf32> to vector<1x1x128xf32>
      %c0_12 = arith.constant 0 : index
      %c0_13 = arith.constant 0 : index
      %c0_14 = arith.constant 0 : index
      %20 = vector.load %arg6[%c0_12, %c0_13, %c0_14] : memref<1x1x128xf32, #tpu.memory_space<vmem>>, vector<1x1x128xf32>
      tpu.vector_store %arg6[%c0_12, %c0_13, %c0_14], %19 {strides = array<i32>} : memref<1x1x128xf32, #tpu.memory_space<vmem>>, vector<1x1x128xf32>,
      %21 = arith.mulf %16, %16 : vector<256x128xf32>
      %cst_15 = arith.constant dense<0.000000e+00> : vector<128xf32>
      %22 = vector.multi_reduction <add>, %21, %cst_15 [0] : vector<256x128xf32> to vector<128xf32>
      %23 = vector.shape_cast %22 : vector<128xf32> to vector<1x128xf32>
      %24 = vector.shape_cast %23 : vector<1x128xf32> to vector<1x1x128xf32>
      %c0_16 = arith.constant 0 : index
      %c0_17 = arith.constant 0 : index
      %c0_18 = arith.constant 0 : index
      %25 = vector.load %arg7[%c0_16, %c0_17, %c0_18] : memref<1x1x128xf32, #tpu.memory_space<vmem>>, vector<1x1x128xf32>
      tpu.vector_store %arg7[%c0_16, %c0_17, %c0_18], %24 {strides = array<i32>} : memref<1x1x128xf32, #tpu.memory_space<vmem>>, vector<1x1x128xf32>,
    } else {
    }
    return
  }
  func.func @transform_0(%arg0: i32, %arg1: i32) -> (i32, i32) {
    %c0_i32 = arith.constant 0 : i32
    return %arg0, %arg1 : i32, i32
  }
  func.func @transform_1(%arg0: i32, %arg1: i32) -> (i32, i32) {
    %c0_i32 = arith.constant 0 : i32
    %c0_i32_0 = arith.constant 0 : i32
    %c0_i32_1 = arith.constant 0 : i32
    return %c0_i32, %c0_i32_0 : i32, i32
  }
  func.func @transform_2(%arg0: i32, %arg1: i32) -> (i32, i32) {
    %c1_i32 = arith.constant 1 : i32
    %c0_i32 = arith.constant 0 : i32
    return %arg0, %c1_i32 : i32, i32
  }
  func.func @transform_3(%arg0: i32, %arg1: i32) -> (i32, i32) {
    %c0_i32 = arith.constant 0 : i32
    %c0_i32_0 = arith.constant 0 : i32
    return %arg0, %c0_i32 : i32, i32
  }
  func.func @transform_4(%arg0: i32, %arg1: i32) -> (i32, i32, i32) {
    %c0_i32 = arith.constant 0 : i32
    %c0_i32_0 = arith.constant 0 : i32
    %c0_i32_1 = arith.constant 0 : i32
    return %arg0, %c0_i32, %c0_i32_0 : i32, i32, i32
  }
  func.func @transform_5(%arg0: i32, %arg1: i32) -> (i32, i32, i32) {
    %c0_i32 = arith.constant 0 : i32
    %c0_i32_0 = arith.constant 0 : i32
    %c0_i32_1 = arith.constant 0 : i32
    return %arg0, %c0_i32, %c0_i32_0 : i32, i32, i32
  }
}

</mosaic_0001>

<llo_original>
// kernel: graph_convolution_bs_forward.5
$region0: #{graph_convolution_bs_forward.5}
  #allocation0 [shape = 'u32[]', space=smem, size = 0x4, offset = 0x4, fixed_abs, tag = 'smem constant byte address 0x4 - core index']
  #allocation1 [shape = 'u32[72,128]{1,0:T(1,128)}', space=vmem, size = 0x9000, scoped, tag = 'internal scratch']
  %s0 = inlined_call_operand.hbm [shape: f32[256,128], index: 0, kind: input, shape index: {}, may-alias: {0,3}]
  %s1 = inlined_call_operand.vmem [shape: f32[1,128], index: 1, kind: input, shape index: {}]
  %s2 = inlined_call_operand.vmem [shape: f32[1,128], index: 2, kind: input, shape index: {}]
  %s3 = inlined_call_operand.hbm [shape: f32[256,128], index: 3, kind: output, shape index: {}, may-alias: {0,3}]
  %s4 = sld [smem:[#allocation0]]
  $region26: #{graph_convolution_bs_forward.5} parent=0
    _
  %s6 = ssub.s32 1, %s4
  %s7 = scalar_select 0, %s6, %s4
  $region1: #{graph_convolution_bs_forward.5} parent=0
    #allocation2 [shape = 'u8[131072]{0}', space=vmem, size = 0x20000, scoped, tag = 'input window, operand 0, single buffered']
    #allocation3 [shape = 's32[1]{0}', space=sflag, size = 0x4, scoped, tag = 'scoped memory for graph_convolution_bs_forward.5']
    #allocation4 [shape = 's32[1]{0}', space=sflag, size = 0x4, scoped, tag = 'scoped memory for graph_convolution_bs_forward.5']
    #allocation5 [shape = 'u8[131072]{0}', space=vmem, size = 0x20000, scoped, tag = 'output window, operand 0, single buffered']
    %8 = vsyncpa [#allocation3], 0
    %9 = vsyncpa [#allocation4], 0
    // Predicated region
    $region2: #{graph_convolution_bs_forward.5} parent=1 // pred_check
      _
    $region3: #{graph_convolution_bs_forward.5} parent=1 // pred_check_branch
      %11 = sbr.rel (0) target = $region5
    $region4: #{graph_convolution_bs_forward.5} parent=1 // pred_region
      %13 = vsyncadd [#allocation3], 0
      %s14 = sshll.u32 %s0, 4
      %s15 = int_to_ptr.hbm [resolvable:$true] %s14
      %s16 = sshll.u32 [#allocation2], 4
      %s17 = int_to_ptr.vmem [resolvable:$true] %s16
      %22 = dma.hbm_to_vmem [thread:$0]  %s15, 4096, %s17, [#allocation3], 128, 128, 8
    $region5: #{graph_convolution_bs_forward.5} parent=1 // pred_fallthru
      _
    // Predicated region
    $region6: #{graph_convolution_bs_forward.5} parent=1 // pred_check
      _
    $region7: #{graph_convolution_bs_forward.5} parent=1 // pred_check_branch
      %24 = sbr.rel (0) target = $region9
    $region8: #{graph_convolution_bs_forward.5} parent=1 // pred_region
      _
    $region9: #{graph_convolution_bs_forward.5} parent=1 // pred_fallthru
      _
    // Predicated region
    $region10: #{graph_convolution_bs_forward.5} parent=1 // pred_check
      _
    $region11: #{graph_convolution_bs_forward.5} parent=1 // pred_check_branch
      %26 = sbr.rel (0) target = $region13
    $region12: #{graph_convolution_bs_forward.5} parent=1 // pred_region
      _
    $region13: #{graph_convolution_bs_forward.5} parent=1 // pred_fallthru
      _
    // Predicated region
    $region14: #{graph_convolution_bs_forward.5} parent=1 // pred_check
      _
    $region15: #{graph_convolution_bs_forward.5} parent=1 // pred_check_branch
      %28 = sbr.rel (0) target = $region17
    $region16: #{graph_convolution_bs_forward.5} parent=1 // pred_region
      %30 = dma.done [#allocation3], 4096
    $region17: #{graph_convolution_bs_forward.5} parent=1 // pred_fallthru
      _
    %v31 = vld [vmem:[#allocation2] sm:$0xff]
    %v32 = vld [vmem:[#allocation2 + $0x8] sm:$0xff]
    %v33 = vld [vmem:[#allocation2 + $0x10] sm:$0xff]
    %v34 = vld [vmem:[#allocation2 + $0x18] sm:$0xff]
    %v35 = vld [vmem:[#allocation2 + $0x20] sm:$0xff]
    %v36 = vld [vmem:[#allocation2 + $0x28] sm:$0xff]
    %v37 = vld [vmem:[#allocation2 + $0x30] sm:$0xff]
    %v38 = vld [vmem:[#allocation2 + $0x38] sm:$0xff]
    %v39 = vld [vmem:[#allocation2 + $0x40] sm:$0xff]
    %v40 = vld [vmem:[#allocation2 + $0x48] sm:$0xff]
    %v41 = vld [vmem:[#allocation2 + $0x50] sm:$0xff]
    %v42 = vld [vmem:[#allocation2 + $0x58] sm:$0xff]
    %v43 = vld [vmem:[#allocation2 + $0x60] sm:$0xff]
    %v44 = vld [vmem:[#allocation2 + $0x68] sm:$0xff]
    %v45 = vld [vmem:[#allocation2 + $0x70] sm:$0xff]
    %v46 = vld [vmem:[#allocation2 + $0x78] sm:$0xff]
    %v47 = vld [vmem:[#allocation2 + $0x80] sm:$0xff]
    %v48 = vld [vmem:[#allocation2 + $0x88] sm:$0xff]
    %v49 = vld [vmem:[#allocation2 + $0x90] sm:$0xff]
    %v50 = vld [vmem:[#allocation2 + $0x98] sm:$0xff]
    %v51 = vld [vmem:[#allocation2 + $0xa0] sm:$0xff]
    %v52 = vld [vmem:[#allocation2 + $0xa8] sm:$0xff]
    %v53 = vld [vmem:[#allocation2 + $0xb0] sm:$0xff]
    %v54 = vld [vmem:[#allocation2 + $0xb8] sm:$0xff]
    %v55 = vld [vmem:[#allocation2 + $0xc0] sm:$0xff]
    %v56 = vld [vmem:[#allocation2 + $0xc8] sm:$0xff]
    %v57 = vld [vmem:[#allocation2 + $0xd0] sm:$0xff]
    %v58 = vld [vmem:[#allocation2 + $0xd8] sm:$0xff]
    %v59 = vld [vmem:[#allocation2 + $0xe0] sm:$0xff]
    %v60 = vld [vmem:[#allocation2 + $0xe8] sm:$0xff]
    %v61 = vld [vmem:[#allocation2 + $0xf0] sm:$0xff]
    %v62 = vld [vmem:[#allocation2 + $0xf8] sm:$0xff]
    %v63 = vld [vmem:[%s1] sm:$0x1]
    %v65 = vperm.slane %v63, 0
    %v67 = vmul.f32 %v31, %v65
    %v68 = vmul.f32 %v32, %v65
    %v69 = vmul.f32 %v33, %v65
    %v70 = vmul.f32 %v34, %v65
    %v71 = vmul.f32 %v35, %v65
    %v72 = vmul.f32 %v36, %v65
    %v73 = vmul.f32 %v37, %v65
    %v74 = vmul.f32 %v38, %v65
    %v75 = vmul.f32 %v39, %v65
    %v76 = vmul.f32 %v40, %v65
    %v77 = vmul.f32 %v41, %v65
    %v78 = vmul.f32 %v42, %v65
    %v79 = vmul.f32 %v43, %v65
    %v80 = vmul.f32 %v44, %v65
    %v81 = vmul.f32 %v45, %v65
    %v82 = vmul.f32 %v46, %v65
    %v83 = vmul.f32 %v47, %v65
    %v84 = vmul.f32 %v48, %v65
    %v85 = vmul.f32 %v49, %v65
    %v86 = vmul.f32 %v50, %v65
    %v87 = vmul.f32 %v51, %v65
    %v88 = vmul.f32 %v52, %v65
    %v89 = vmul.f32 %v53, %v65
    %v90 = vmul.f32 %v54, %v65
    %v91 = vmul.f32 %v55, %v65
    %v92 = vmul.f32 %v56, %v65
    %v93 = vmul.f32 %v57, %v65
    %v94 = vmul.f32 %v58, %v65
    %v95 = vmul.f32 %v59, %v65
    %v96 = vmul.f32 %v60, %v65
    %v97 = vmul.f32 %v61, %v65
    %v98 = vmul.f32 %v62, %v65
    %v99 = vld [vmem:[%s2] sm:$0x1]
    %v101 = vperm.slane %v99, 0
    %v103 = vadd.f32 %v67, %v101
    %v104 = vadd.f32 %v68, %v101
    %v105 = vadd.f32 %v69, %v101
    %v106 = vadd.f32 %v70, %v101
    %v107 = vadd.f32 %v71, %v101
    %v108 = vadd.f32 %v72, %v101
    %v109 = vadd.f32 %v73, %v101
    %v110 = vadd.f32 %v74, %v101
    %v111 = vadd.f32 %v75, %v101
    %v112 = vadd.f32 %v76, %v101
    %v113 = vadd.f32 %v77, %v101
    %v114 = vadd.f32 %v78, %v101
    %v115 = vadd.f32 %v79, %v101
    %v116 = vadd.f32 %v80, %v101
    %v117 = vadd.f32 %v81, %v101
    %v118 = vadd.f32 %v82, %v101
    %v119 = vadd.f32 %v83, %v101
    %v120 = vadd.f32 %v84, %v101
    %v121 = vadd.f32 %v85, %v101
    %v122 = vadd.f32 %v86, %v101
    %v123 = vadd.f32 %v87, %v101
    %v124 = vadd.f32 %v88, %v101
    %v125 = vadd.f32 %v89, %v101
    %v126 = vadd.f32 %v90, %v101
    %v127 = vadd.f32 %v91, %v101
    %v128 = vadd.f32 %v92, %v101
    %v129 = vadd.f32 %v93, %v101
    %v130 = vadd.f32 %v94, %v101
    %v131 = vadd.f32 %v95, %v101
    %v132 = vadd.f32 %v96, %v101
    %v133 = vadd.f32 %v97, %v101
    %v134 = vadd.f32 %v98, %v101
    %135 = vst [vmem:[#allocation5] sm:$0xff] %v103
    %136 = vst [vmem:[#allocation5 + $0x8] sm:$0xff] %v104
    %137 = vst [vmem:[#allocation5 + $0x10] sm:$0xff] %v105
    %138 = vst [vmem:[#allocation5 + $0x18] sm:$0xff] %v106
    %139 = vst [vmem:[#allocation5 + $0x20] sm:$0xff] %v107
    %140 = vst [vmem:[#allocation5 + $0x28] sm:$0xff] %v108
    %141 = vst [vmem:[#allocation5 + $0x30] sm:$0xff] %v109
    %142 = vst [vmem:[#allocation5 + $0x38] sm:$0xff] %v110
    %143 = vst [vmem:[#allocation5 + $0x40] sm:$0xff] %v111
    %144 = vst [vmem:[#allocation5 + $0x48] sm:$0xff] %v112
    %145 = vst [vmem:[#allocation5 + $0x50] sm:$0xff] %v113
    %146 = vst [vmem:[#allocation5 + $0x58] sm:$0xff] %v114
    %147 = vst [vmem:[#allocation5 + $0x60] sm:$0xff] %v115
    %148 = vst [vmem:[#allocation5 + $0x68] sm:$0xff] %v116
    %149 = vst [vmem:[#allocation5 + $0x70] sm:$0xff] %v117
    %150 = vst [vmem:[#allocation5 + $0x78] sm:$0xff] %v118
    %151 = vst [vmem:[#allocation5 + $0x80] sm:$0xff] %v119
    %152 = vst [vmem:[#allocation5 + $0x88] sm:$0xff] %v120
    %153 = vst [vmem:[#allocation5 + $0x90] sm:$0xff] %v121
    %154 = vst [vmem:[#allocation5 + $0x98] sm:$0xff] %v122
    %155 = vst [vmem:[#allocation5 + $0xa0] sm:$0xff] %v123
    %156 = vst [vmem:[#allocation5 + $0xa8] sm:$0xff] %v124
    %157 = vst [vmem:[#allocation5 + $0xb0] sm:$0xff] %v125
    %158 = vst [vmem:[#allocation5 + $0xb8] sm:$0xff] %v126
    %159 = vst [vmem:[#allocation5 + $0xc0] sm:$0xff] %v127
    %160 = vst [vmem:[#allocation5 + $0xc8] sm:$0xff] %v128
    %161 = vst [vmem:[#allocation5 + $0xd0] sm:$0xff] %v129
    %162 = vst [vmem:[#allocation5 + $0xd8] sm:$0xff] %v130
    %163 = vst [vmem:[#allocation5 + $0xe0] sm:$0xff] %v131
    %164 = vst [vmem:[#allocation5 + $0xe8] sm:$0xff] %v132
    %165 = vst [vmem:[#allocation5 + $0xf0] sm:$0xff] %v133
    %166 = vst [vmem:[#allocation5 + $0xf8] sm:$0xff] %v134
    // Predicated region
    $region18: #{graph_convolution_bs_forward.5} parent=1 // pred_check
      _
    $region19: #{graph_convolution_bs_forward.5} parent=1 // pred_check_branch
      %168 = sbr.rel (0) target = $region21
    $region20: #{graph_convolution_bs_forward.5} parent=1 // pred_region
      %170 = vsyncadd [#allocation4], 0
      %s171 = sshll.u32 [#allocation5], 4
      %s172 = int_to_ptr.vmem [resolvable:$true] %s171
      %s173 = sshll.u32 %s3, 4
      %s174 = int_to_ptr.hbm [resolvable:$true] %s173
      %179 = dma.vmem_to_hbm [thread:$0]  %s172, 4096, %s174, [#allocation4], 128, 128, 8
    $region21: #{graph_convolution_bs_forward.5} parent=1 // pred_fallthru
      _
    // Predicated region
    $region22: #{graph_convolution_bs_forward.5} parent=1 // pred_check
      _
    $region23: #{graph_convolution_bs_forward.5} parent=1 // pred_check_branch
      %181 = sbr.rel (0) target = $region25
    $region24: #{graph_convolution_bs_forward.5} parent=1 // pred_region
      %183 = dma.done [#allocation4], 4096
    $region25: #{graph_convolution_bs_forward.5} parent=1 // pred_fallthru
      _
    %184 = vsyncpa [#allocation3], 1
    %185 = vsyncpa [#allocation4], 1

// kernel: graph_convolution_bs_forward.3
$region0: #{graph_convolution_bs_forward.3}
  #allocation0 [shape = 'u32[]', space=smem, size = 0x4, offset = 0x4, fixed_abs, tag = 'smem constant byte address 0x4 - core index']
  #allocation1 [shape = 'u32[72,128]{1,0:T(1,128)}', space=vmem, size = 0x9000, scoped, tag = 'internal scratch']
  #allocation2 [shape = 'f32[256,256]{1,0:T(8,128)}', space=vmem, size = 0x40000, scoped, tag = 'scratch operand']
  %s0 = inlined_call_operand.hbm [shape: f32[256,128], index: 0, kind: input, shape index: {}]
  %s1 = inlined_call_operand.vmem [shape: bf16[128,256], index: 1, kind: input, shape index: {}]
  %s2 = inlined_call_operand.vmem [shape: bf16[256,256], index: 2, kind: output, shape index: {}]
  %s3 = sld [smem:[#allocation0]]
  $region30: #{graph_convolution_bs_forward.3} parent=0
    _
  %s5 = ssub.s32 1, %s3
  %s6 = scalar_select 0, %s5, %s3
  $region1: #{graph_convolution_bs_forward.3} parent=0
    #allocation3 [shape = 'u8[131072]{0}', space=vmem, size = 0x20000, scoped, tag = 'input window, operand 0, single buffered']
    #allocation4 [shape = 's32[1]{0}', space=sflag, size = 0x4, scoped, tag = 'scoped memory for graph_convolution_bs_forward.3']
    %7 = vsyncpa [#allocation4], 0
    // Predicated region
    $region2: #{graph_convolution_bs_forward.3} parent=1 // pred_check
      _
    $region3: #{graph_convolution_bs_forward.3} parent=1 // pred_check_branch
      %9 = sbr.rel (0) target = $region5
    $region4: #{graph_convolution_bs_forward.3} parent=1 // pred_region
      %11 = vsyncadd [#allocation4], 0
      %s12 = sshll.u32 %s0, 4
      %s13 = int_to_ptr.hbm [resolvable:$true] %s12
      %s14 = sshll.u32 [#allocation3], 4
      %s15 = int_to_ptr.vmem [resolvable:$true] %s14
      %20 = dma.hbm_to_vmem [thread:$0]  %s13, 4096, %s15, [#allocation4], 128, 128, 8
    $region5: #{graph_convolution_bs_forward.3} parent=1 // pred_fallthru
      _
    // Predicated region
    $region6: #{graph_convolution_bs_forward.3} parent=1 // pred_check
      _
    $region7: #{graph_convolution_bs_forward.3} parent=1 // pred_check_branch
      %22 = sbr.rel (0) target = $region9
    $region8: #{graph_convolution_bs_forward.3} parent=1 // pred_region
      _
    $region9: #{graph_convolution_bs_forward.3} parent=1 // pred_fallthru
      _
    // Predicated region
    $region10: #{graph_convolution_bs_forward.3} parent=1 // pred_check
      _
    $region11: #{graph_convolution_bs_forward.3} parent=1 // pred_check_branch
      %24 = sbr.rel (0) target = $region13
    $region12: #{graph_convolution_bs_forward.3} parent=1 // pred_region
      %26 = dma.done [#allocation4], 4096
    $region13: #{graph_convolution_bs_forward.3} parent=1 // pred_fallthru
      _
    %p27 = scmp.eq.s32.totalorder 0, 0
    // Predicated region
    $region14: #{graph_convolution_bs_forward.3} parent=1 // pred_check
      %p28 = pneg %p27
    $region15: #{graph_convolution_bs_forward.3} parent=1 // pred_check_branch
      %30 = sbr.rel (%p28) target = $region17
    $region16: #{graph_convolution_bs_forward.3} parent=1 // pred_region
      %31 = vst [vmem:[#allocation2] sm:$0xff] 0.0
      %32 = vst [vmem:[#allocation2 + $0x8] sm:$0xff] 0.0
      %33 = vst [vmem:[#allocation2 + $0x10] sm:$0xff] 0.0
      %34 = vst [vmem:[#allocation2 + $0x18] sm:$0xff] 0.0
      %35 = vst [vmem:[#allocation2 + $0x20] sm:$0xff] 0.0
      %36 = vst [vmem:[#allocation2 + $0x28] sm:$0xff] 0.0
      %37 = vst [vmem:[#allocation2 + $0x30] sm:$0xff] 0.0
      %38 = vst [vmem:[#allocation2 + $0x38] sm:$0xff] 0.0
      %39 = vst [vmem:[#allocation2 + $0x40] sm:$0xff] 0.0
      %40 = vst [vmem:[#allocation2 + $0x48] sm:$0xff] 0.0
      %41 = vst [vmem:[#allocation2 + $0x50] sm:$0xff] 0.0
      %42 = vst [vmem:[#allocation2 + $0x58] sm:$0xff] 0.0
      %43 = vst [vmem:[#allocation2 + $0x60] sm:$0xff] 0.0
      %44 = vst [vmem:[#allocation2 + $0x68] sm:$0xff] 0.0
      %45 = vst [vmem:[#allocation2 + $0x70] sm:$0xff] 0.0
      %46 = vst [vmem:[#allocation2 + $0x78] sm:$0xff] 0.0
      %47 = vst [vmem:[#allocation2 + $0x80] sm:$0xff] 0.0
      %48 = vst [vmem:[#allocation2 + $0x88] sm:$0xff] 0.0
      %49 = vst [vmem:[#allocation2 + $0x90] sm:$0xff] 0.0
      %50 = vst [vmem:[#allocation2 + $0x98] sm:$0xff] 0.0
      %51 = vst [vmem:[#allocation2 + $0xa0] sm:$0xff] 0.0
      %52 = vst [vmem:[#allocation2 + $0xa8] sm:$0xff] 0.0
      %53 = vst [vmem:[#allocation2 + $0xb0] sm:$0xff] 0.0
      %54 = vst [vmem:[#allocation2 + $0xb8] sm:$0xff] 0.0
      %55 = vst [vmem:[#allocation2 + $0xc0] sm:$0xff] 0.0
      %56 = vst [vmem:[#allocation2 + $0xc8] sm:$0xff] 0.0
      %57 = vst [vmem:[#allocation2 + $0xd0] sm:$0xff] 0.0
      %58 = vst [vmem:[#allocation2 + $0xd8] sm:$0xff] 0.0
      %59 = vst [vmem:[#allocation2 + $0xe0] sm:$0xff] 0.0
      %60 = vst [vmem:[#allocation2 + $0xe8] sm:$0xff] 0.0
      %61 = vst [vmem:[#allocation2 + $0xf0] sm:$0xff] 0.0
      %62 = vst [vmem:[#allocation2 + $0xf8] sm:$0xff] 0.0
      %63 = vst [vmem:[#allocation2 + $0x100] sm:$0xff] 0.0
      %64 = vst [vmem:[#allocation2 + $0x108] sm:$0xff] 0.0
      %65 = vst [vmem:[#allocation2 + $0x110] sm:$0xff] 0.0
      %66 = vst [vmem:[#allocation2 + $0x118] sm:$0xff] 0.0
      %67 = vst [vmem:[#allocation2 + $0x120] sm:$0xff] 0.0
      %68 = vst [vmem:[#allocation2 + $0x128] sm:$0xff] 0.0
      %69 = vst [vmem:[#allocation2 + $0x130] sm:$0xff] 0.0
      %70 = vst [vmem:[#allocation2 + $0x138] sm:$0xff] 0.0
      %71 = vst [vmem:[#allocation2 + $0x140] sm:$0xff] 0.0
      %72 = vst [vmem:[#allocation2 + $0x148] sm:$0xff] 0.0
      %73 = vst [vmem:[#allocation2 + $0x150] sm:$0xff] 0.0
      %74 = vst [vmem:[#allocation2 + $0x158] sm:$0xff] 0.0
      %75 = vst [vmem:[#allocation2 + $0x160] sm:$0xff] 0.0
      %76 = vst [vmem:[#allocation2 + $0x168] sm:$0xff] 0.0
      %77 = vst [vmem:[#allocation2 + $0x170] sm:$0xff] 0.0
      %78 = vst [vmem:[#allocation2 + $0x178] sm:$0xff] 0.0
      %79 = vst [vmem:[#allocation2 + $0x180] sm:$0xff] 0.0
      %80 = vst [vmem:[#allocation2 + $0x188] sm:$0xff] 0.0
      %81 = vst [vmem:[#allocation2 + $0x190] sm:$0xff] 0.0
      %82 = vst [vmem:[#allocation2 + $0x198] sm:$0xff] 0.0
      %83 = vst [vmem:[#allocation2 + $0x1a0] sm:$0xff] 0.0
      %84 = vst [vmem:[#allocation2 + $0x1a8] sm:$0xff] 0.0
      %85 = vst [vmem:[#allocation2 + $0x1b0] sm:$0xff] 0.0
      %86 = vst [vmem:[#allocation2 + $0x1b8] sm:$0xff] 0.0
      %87 = vst [vmem:[#allocation2 + $0x1c0] sm:$0xff] 0.0
      %88 = vst [vmem:[#allocation2 + $0x1c8] sm:$0xff] 0.0
      %89 = vst [vmem:[#allocation2 + $0x1d0] sm:$0xff] 0.0
      %90 = vst [vmem:[#allocation2 + $0x1d8] sm:$0xff] 0.0
      %91 = vst [vmem:[#allocation2 + $0x1e0] sm:$0xff] 0.0
      %92 = vst [vmem:[#allocation2 + $0x1e8] sm:$0xff] 0.0
      %93 = vst [vmem:[#allocation2 + $0x1f0] sm:$0xff] 0.0
      %94 = vst [vmem:[#allocation2 + $0x1f8] sm:$0xff] 0.0
    $region17: #{graph_convolution_bs_forward.3} parent=1 // pred_fallthru
      _
    %v95 = vld [vmem:[#allocation2] sm:$0xff]
    %v96 = vld [vmem:[#allocation2 + $0x8] sm:$0xff]
    %v97 = vld [vmem:[#allocation2 + $0x10] sm:$0xff]
    %v98 = vld [vmem:[#allocation2 + $0x18] sm:$0xff]
    %v99 = vld [vmem:[#allocation2 + $0x20] sm:$0xff]
    %v100 = vld [vmem:[#allocation2 + $0x28] sm:$0xff]
    %v101 = vld [vmem:[#allocation2 + $0x30] sm:$0xff]
    %v102 = vld [vmem:[#allocation2 + $0x38] sm:$0xff]
    %v103 = vld [vmem:[#allocation2 + $0x40] sm:$0xff]
    %v104 = vld [vmem:[#allocation2 + $0x48] sm:$0xff]
    %v105 = vld [vmem:[#allocation2 + $0x50] sm:$0xff]
    %v106 = vld [vmem:[#allocation2 + $0x58] sm:$0xff]
    %v107 = vld [vmem:[#allocation2 + $0x60] sm:$0xff]
    %v108 = vld [vmem:[#allocation2 + $0x68] sm:$0xff]
    %v109 = vld [vmem:[#allocation2 + $0x70] sm:$0xff]
    %v110 = vld [vmem:[#allocation2 + $0x78] sm:$0xff]
    %v111 = vld [vmem:[#allocation2 + $0x80] sm:$0xff]
    %v112 = vld [vmem:[#allocation2 + $0x88] sm:$0xff]
    %v113 = vld [vmem:[#allocation2 + $0x90] sm:$0xff]
    %v114 = vld [vmem:[#allocation2 + $0x98] sm:$0xff]
    %v115 = vld [vmem:[#allocation2 + $0xa0] sm:$0xff]
    %v116 = vld [vmem:[#allocation2 + $0xa8] sm:$0xff]
    %v117 = vld [vmem:[#allocation2 + $0xb0] sm:$0xff]
    %v118 = vld [vmem:[#allocation2 + $0xb8] sm:$0xff]
    %v119 = vld [vmem:[#allocation2 + $0xc0] sm:$0xff]
    %v120 = vld [vmem:[#allocation2 + $0xc8] sm:$0xff]
    %v121 = vld [vmem:[#allocation2 + $0xd0] sm:$0xff]
    %v122 = vld [vmem:[#allocation2 + $0xd8] sm:$0xff]
    %v123 = vld [vmem:[#allocation2 + $0xe0] sm:$0xff]
    %v124 = vld [vmem:[#allocation2 + $0xe8] sm:$0xff]
    %v125 = vld [vmem:[#allocation2 + $0xf0] sm:$0xff]
    %v126 = vld [vmem:[#allocation2 + $0xf8] sm:$0xff]
    %v127 = vld [vmem:[#allocation2 + $0x100] sm:$0xff]
    %v128 = vld [vmem:[#allocation2 + $0x108] sm:$0xff]
    %v129 = vld [vmem:[#allocation2 + $0x110] sm:$0xff]
    %v130 = vld [vmem:[#allocation2 + $0x118] sm:$0xff]
    %v131 = vld [vmem:[#allocation2 + $0x120] sm:$0xff]
    %v132 = vld [vmem:[#allocation2 + $0x128] sm:$0xff]
    %v133 = vld [vmem:[#allocation2 + $0x130] sm:$0xff]
    %v134 = vld [vmem:[#allocation2 + $0x138] sm:$0xff]
    %v135 = vld [vmem:[#allocation2 + $0x140] sm:$0xff]
    %v136 = vld [vmem:[#allocation2 + $0x148] sm:$0xff]
    %v137 = vld [vmem:[#allocation2 + $0x150] sm:$0xff]
    %v138 = vld [vmem:[#allocation2 + $0x158] sm:$0xff]
    %v139 = vld [vmem:[#allocation2 + $0x160] sm:$0xff]
    %v140 = vld [vmem:[#allocation2 + $0x168] sm:$0xff]
    %v141 = vld [vmem:[#allocation2 + $0x170] sm:$0xff]
    %v142 = vld [vmem:[#allocation2 + $0x178] sm:$0xff]
    %v143 = vld [vmem:[#allocation2 + $0x180] sm:$0xff]
    %v144 = vld [vmem:[#allocation2 + $0x188] sm:$0xff]
    %v145 = vld [vmem:[#allocation2 + $0x190] sm:$0xff]
    %v146 = vld [vmem:[#allocation2 + $0x198] sm:$0xff]
    %v147 = vld [vmem:[#allocation2 + $0x1a0] sm:$0xff]
    %v148 = vld [vmem:[#allocation2 + $0x1a8] sm:$0xff]
    %v149 = vld [vmem:[#allocation2 + $0x1b0] sm:$0xff]
    %v150 = vld [vmem:[#allocation2 + $0x1b8] sm:$0xff]
    %v151 = vld [vmem:[#allocation2 + $0x1c0] sm:$0xff]
    %v152 = vld [vmem:[#allocation2 + $0x1c8] sm:$0xff]
    %v153 = vld [vmem:[#allocation2 + $0x1d0] sm:$0xff]
    %v154 = vld [vmem:[#allocation2 + $0x1d8] sm:$0xff]
    %v155 = vld [vmem:[#allocation2 + $0x1e0] sm:$0xff]
    %v156 = vld [vmem:[#allocation2 + $0x1e8] sm:$0xff]
    %v157 = vld [vmem:[#allocation2 + $0x1f0] sm:$0xff]
    %v158 = vld [vmem:[#allocation2 + $0x1f8] sm:$0xff]
    %v159 = vld [vmem:[#allocation3] sm:$0xff]
    %v160 = vld [vmem:[#allocation3 + $0x8] sm:$0xff]
    %v161 = vld [vmem:[#allocation3 + $0x10] sm:$0xff]
    %v162 = vld [vmem:[#allocation3 + $0x18] sm:$0xff]
    %v163 = vld [vmem:[#allocation3 + $0x20] sm:$0xff]
    %v164 = vld [vmem:[#allocation3 + $0x28] sm:$0xff]
    %v165 = vld [vmem:[#allocation3 + $0x30] sm:$0xff]
    %v166 = vld [vmem:[#allocation3 + $0x38] sm:$0xff]
    %v167 = vld [vmem:[#allocation3 + $0x40] sm:$0xff]
    %v168 = vld [vmem:[#allocation3 + $0x48] sm:$0xff]
    %v169 = vld [vmem:[#allocation3 + $0x50] sm:$0xff]
    %v170 = vld [vmem:[#allocation3 + $0x58] sm:$0xff]
    %v171 = vld [vmem:[#allocation3 + $0x60] sm:$0xff]
    %v172 = vld [vmem:[#allocation3 + $0x68] sm:$0xff]
    %v173 = vld [vmem:[#allocation3 + $0x70] sm:$0xff]
    %v174 = vld [vmem:[#allocation3 + $0x78] sm:$0xff]
    %v175 = vld [vmem:[#allocation3 + $0x80] sm:$0xff]
    %v176 = vld [vmem:[#allocation3 + $0x88] sm:$0xff]
    %v177 = vld [vmem:[#allocation3 + $0x90] sm:$0xff]
    %v178 = vld [vmem:[#allocation3 + $0x98] sm:$0xff]
    %v179 = vld [vmem:[#allocation3 + $0xa0] sm:$0xff]
    %v180 = vld [vmem:[#allocation3 + $0xa8] sm:$0xff]
    %v181 = vld [vmem:[#allocation3 + $0xb0] sm:$0xff]
    %v182 = vld [vmem:[#allocation3 + $0xb8] sm:$0xff]
    %v183 = vld [vmem:[#allocation3 + $0xc0] sm:$0xff]
    %v184 = vld [vmem:[#allocation3 + $0xc8] sm:$0xff]
    %v185 = vld [vmem:[#allocation3 + $0xd0] sm:$0xff]
    %v186 = vld [vmem:[#allocation3 + $0xd8] sm:$0xff]
    %v187 = vld [vmem:[#allocation3 + $0xe0] sm:$0xff]
    %v188 = vld [vmem:[#allocation3 + $0xe8] sm:$0xff]
    %v189 = vld [vmem:[#allocation3 + $0xf0] sm:$0xff]
    %v190 = vld [vmem:[#allocation3 + $0xf8] sm:$0xff]
    %v191 = vpack.c.bf16 %v160, %v159
    %v192 = vpack.c.bf16 %v162, %v161
    %v193 = vpack.c.bf16 %v164, %v163
    %v194 = vpack.c.bf16 %v166, %v165
    %v195 = vpack.c.bf16 %v168, %v167
    %v196 = vpack.c.bf16 %v170, %v169
    %v197 = vpack.c.bf16 %v172, %v171
    %v198 = vpack.c.bf16 %v174, %v173
    %v199 = vpack.c.bf16 %v176, %v175
    %v200 = vpack.c.bf16 %v178, %v177
    %v201 = vpack.c.bf16 %v180, %v179
    %v202 = vpack.c.bf16 %v182, %v181
    %v203 = vpack.c.bf16 %v184, %v183
    %v204 = vpack.c.bf16 %v186, %v185
    %v205 = vpack.c.bf16 %v188, %v187
    %v206 = vpack.c.bf16 %v190, %v189
    %v207 = vld [vmem:[%s1] sm:$0xff]
    %v208 = vld [vmem:[%s1 + $0x8] sm:$0xff]
    %v209 = vld [vmem:[%s1 + $0x10] sm:$0xff]
    %v210 = vld [vmem:[%s1 + $0x18] sm:$0xff]
    %v211 = vld [vmem:[%s1 + $0x20] sm:$0xff]
    %v212 = vld [vmem:[%s1 + $0x28] sm:$0xff]
    %v213 = vld [vmem:[%s1 + $0x30] sm:$0xff]
    %v214 = vld [vmem:[%s1 + $0x38] sm:$0xff]
    %v215 = vld [vmem:[%s1 + $0x40] sm:$0xff]
    %v216 = vld [vmem:[%s1 + $0x48] sm:$0xff]
    %v217 = vld [vmem:[%s1 + $0x50] sm:$0xff]
    %v218 = vld [vmem:[%s1 + $0x58] sm:$0xff]
    %v219 = vld [vmem:[%s1 + $0x60] sm:$0xff]
    %v220 = vld [vmem:[%s1 + $0x68] sm:$0xff]
    %v221 = vld [vmem:[%s1 + $0x70] sm:$0xff]
    %v222 = vld [vmem:[%s1 + $0x78] sm:$0xff]
    %v239 = vunpack.c.l.b16 %v207
    %v240 = vunpack.c.h.b16 %v207
    %v241 = vunpack.c.l.b16 %v208
    %v242 = vunpack.c.h.b16 %v208
    %v243 = vunpack.c.l.b16 %v209
    %v244 = vunpack.c.h.b16 %v209
    %v245 = vunpack.c.l.b16 %v210
    %v246 = vunpack.c.h.b16 %v210
    %v247 = vunpack.c.l.b16 %v211
    %v248 = vunpack.c.h.b16 %v211
    %v249 = vunpack.c.l.b16 %v212
    %v250 = vunpack.c.h.b16 %v212
    %v251 = vunpack.c.l.b16 %v213
    %v252 = vunpack.c.h.b16 %v213
    %v253 = vunpack.c.l.b16 %v214
    %v254 = vunpack.c.h.b16 %v214
    %v255 = vunpack.c.l.b16 %v215
    %v256 = vunpack.c.h.b16 %v215
    %v257 = vunpack.c.l.b16 %v216
    %v258 = vunpack.c.h.b16 %v216
    %v259 = vunpack.c.l.b16 %v217
    %v260 = vunpack.c.h.b16 %v217
    %v261 = vunpack.c.l.b16 %v218
    %v262 = vunpack.c.h.b16 %v218
    %v263 = vunpack.c.l.b16 %v219
    %v264 = vunpack.c.h.b16 %v219
    %v265 = vunpack.c.l.b16 %v220
    %v266 = vunpack.c.h.b16 %v220
    %v267 = vunpack.c.l.b16 %v221
    %v268 = vunpack.c.h.b16 %v221
    %v269 = vunpack.c.l.b16 %v222
    %v270 = vunpack.c.h.b16 %v222
    %v271 = vpack.c.b16 %v241, %v239
    %v272 = vpack.c.b16 %v242, %v240
    %v273 = vpack.c.b16 %v245, %v243
    %v274 = vpack.c.b16 %v246, %v244
    %v275 = vpack.c.b16 %v249, %v247
    %v276 = vpack.c.b16 %v250, %v248
    %v277 = vpack.c.b16 %v253, %v251
    %v278 = vpack.c.b16 %v254, %v252
    %v279 = vpack.c.b16 %v257, %v255
    %v280 = vpack.c.b16 %v258, %v256
    %v281 = vpack.c.b16 %v261, %v259
    %v282 = vpack.c.b16 %v262, %v260
    %v283 = vpack.c.b16 %v265, %v263
    %v284 = vpack.c.b16 %v266, %v264
    %v285 = vpack.c.b16 %v269, %v267
    %v286 = vpack.c.b16 %v270, %v268
    %303 = vmatpush.bf16.msra.mxu0 %v285
    %304 = vmatpush.bf16.msra.mxu0 %v283
    %305 = vmatpush.bf16.msra.mxu0 %v281
    %306 = vmatpush.bf16.msra.mxu0 %v279
    %307 = vmatpush.bf16.msra.mxu0 %v277
    %308 = vmatpush.bf16.msra.mxu0 %v275
    %309 = vmatpush.bf16.msra.mxu0 %v273
    %310 = vmatpush.bf16.msra.mxu0 %v271
    %311 = vmatmul.bf16.gmra.mxu0 %v191
    %v312 = vpop.f32.mrf.mxu0
    %v313 = vadd.f32 0.0, %v312
    %v314 = vpop.f32.mrf.mxu0
    %v315 = vadd.f32 0.0, %v314
    %316 = vmatmul.bf16.gmra.mxu0 %v192
    %v317 = vpop.f32.mrf.mxu0
    %v318 = vadd.f32 0.0, %v317
    %v319 = vpop.f32.mrf.mxu0
    %v320 = vadd.f32 0.0, %v319
    %321 = vmatmul.bf16.gmra.mxu0 %v193
    %v322 = vpop.f32.mrf.mxu0
    %v323 = vadd.f32 0.0, %v322
    %v324 = vpop.f32.mrf.mxu0
    %v325 = vadd.f32 0.0, %v324
    %326 = vmatmul.bf16.gmra.mxu0 %v194
    %v327 = vpop.f32.mrf.mxu0
    %v328 = vadd.f32 0.0, %v327
    %v329 = vpop.f32.mrf.mxu0
    %v330 = vadd.f32 0.0, %v329
    %331 = vmatmul.bf16.gmra.mxu0 %v195
    %v332 = vpop.f32.mrf.mxu0
    %v333 = vadd.f32 0.0, %v332
    %v334 = vpop.f32.mrf.mxu0
    %v335 = vadd.f32 0.0, %v334
    %336 = vmatmul.bf16.gmra.mxu0 %v196
    %v337 = vpop.f32.mrf.mxu0
    %v338 = vadd.f32 0.0, %v337
    %v339 = vpop.f32.mrf.mxu0
    %v340 = vadd.f32 0.0, %v339
    %341 = vmatmul.bf16.gmra.mxu0 %v197
    %v342 = vpop.f32.mrf.mxu0
    %v343 = vadd.f32 0.0, %v342
    %v344 = vpop.f32.mrf.mxu0
    %v345 = vadd.f32 0.0, %v344
    %346 = vmatmul.bf16.gmra.mxu0 %v198
    %v347 = vpop.f32.mrf.mxu0
    %v348 = vadd.f32 0.0, %v347
    %v349 = vpop.f32.mrf.mxu0
    %v350 = vadd.f32 0.0, %v349
    %351 = vmatmul.bf16.gmra.mxu0 %v199
    %v352 = vpop.f32.mrf.mxu0
    %v353 = vadd.f32 0.0, %v352
    %v354 = vpop.f32.mrf.mxu0
    %v355 = vadd.f32 0.0, %v354
    %356 = vmatmul.bf16.gmra.mxu0 %v200
    %v357 = vpop.f32.mrf.mxu0
    %v358 = vadd.f32 0.0, %v357
    %v359 = vpop.f32.mrf.mxu0
    %v360 = vadd.f32 0.0, %v359
    %361 = vmatmul.bf16.gmra.mxu0 %v201
    %v362 = vpop.f32.mrf.mxu0
    %v363 = vadd.f32 0.0, %v362
    %v364 = vpop.f32.mrf.mxu0
    %v365 = vadd.f32 0.0, %v364
    %366 = vmatmul.bf16.gmra.mxu0 %v202
    %v367 = vpop.f32.mrf.mxu0
    %v368 = vadd.f32 0.0, %v367
    %v369 = vpop.f32.mrf.mxu0
    %v370 = vadd.f32 0.0, %v369
    %371 = vmatmul.bf16.gmra.mxu0 %v203
    %v372 = vpop.f32.mrf.mxu0
    %v373 = vadd.f32 0.0, %v372
    %v374 = vpop.f32.mrf.mxu0
    %v375 = vadd.f32 0.0, %v374
    %376 = vmatmul.bf16.gmra.mxu0 %v204
    %v377 = vpop.f32.mrf.mxu0
    %v378 = vadd.f32 0.0, %v377
    %v379 = vpop.f32.mrf.mxu0
    %v380 = vadd.f32 0.0, %v379
    %381 = vmatmul.bf16.gmra.mxu0 %v205
    %v382 = vpop.f32.mrf.mxu0
    %v383 = vadd.f32 0.0, %v382
    %v384 = vpop.f32.mrf.mxu0
    %v385 = vadd.f32 0.0, %v384
    %386 = vmatmul.bf16.gmra.mxu0 %v206
    %v387 = vpop.f32.mrf.mxu0
    %v388 = vadd.f32 0.0, %v387
    %v389 = vpop.f32.mrf.mxu0
    %v390 = vadd.f32 0.0, %v389
    %391 = vdwg.mxu0
    %392 = vmatpush.bf16.msra.mxu0 %v286
    %393 = vmatpush.bf16.msra.mxu0 %v284
    %394 = vmatpush.bf16.msra.mxu0 %v282
    %395 = vmatpush.bf16.msra.mxu0 %v280
    %396 = vmatpush.bf16.msra.mxu0 %v278
    %397 = vmatpush.bf16.msra.mxu0 %v276
    %398 = vmatpush.bf16.msra.mxu0 %v274
    %399 = vmatpush.bf16.msra.mxu0 %v272
    %400 = vmatmul.bf16.gmra.mxu0 %v191
    %v401 = vpop.f32.mrf.mxu0
    %v402 = vadd.f32 0.0, %v401
    %v403 = vpop.f32.mrf.mxu0
    %v404 = vadd.f32 0.0, %v403
    %405 = vmatmul.bf16.gmra.mxu0 %v192
    %v406 = vpop.f32.mrf.mxu0
    %v407 = vadd.f32 0.0, %v406
    %v408 = vpop.f32.mrf.mxu0
    %v409 = vadd.f32 0.0, %v408
    %410 = vmatmul.bf16.gmra.mxu0 %v193
    %v411 = vpop.f32.mrf.mxu0
    %v412 = vadd.f32 0.0, %v411
    %v413 = vpop.f32.mrf.mxu0
    %v414 = vadd.f32 0.0, %v413
    %415 = vmatmul.bf16.gmra.mxu0 %v194
    %v416 = vpop.f32.mrf.mxu0
    %v417 = vadd.f32 0.0, %v416
    %v418 = vpop.f32.mrf.mxu0
    %v419 = vadd.f32 0.0, %v418
    %420 = vmatmul.bf16.gmra.mxu0 %v195
    %v421 = vpop.f32.mrf.mxu0
    %v422 = vadd.f32 0.0, %v421
    %v423 = vpop.f32.mrf.mxu0
    %v424 = vadd.f32 0.0, %v423
    %425 = vmatmul.bf16.gmra.mxu0 %v196
    %v426 = vpop.f32.mrf.mxu0
    %v427 = vadd.f32 0.0, %v426
    %v428 = vpop.f32.mrf.mxu0
    %v429 = vadd.f32 0.0, %v428
    %430 = vmatmul.bf16.gmra.mxu0 %v197
    %v431 = vpop.f32.mrf.mxu0
    %v432 = vadd.f32 0.0, %v431
    %v433 = vpop.f32.mrf.mxu0
    %v434 = vadd.f32 0.0, %v433
    %435 = vmatmul.bf16.gmra.mxu0 %v198
    %v436 = vpop.f32.mrf.mxu0
    %v437 = vadd.f32 0.0, %v436
    %v438 = vpop.f32.mrf.mxu0
    %v439 = vadd.f32 0.0, %v438
    %440 = vmatmul.bf16.gmra.mxu0 %v199
    %v441 = vpop.f32.mrf.mxu0
    %v442 = vadd.f32 0.0, %v441
    %v443 = vpop.f32.mrf.mxu0
    %v444 = vadd.f32 0.0, %v443
    %445 = vmatmul.bf16.gmra.mxu0 %v200
    %v446 = vpop.f32.mrf.mxu0
    %v447 = vadd.f32 0.0, %v446
    %v448 = vpop.f32.mrf.mxu0
    %v449 = vadd.f32 0.0, %v448
    %450 = vmatmul.bf16.gmra.mxu0 %v201
    %v451 = vpop.f32.mrf.mxu0
    %v452 = vadd.f32 0.0, %v451
    %v453 = vpop.f32.mrf.mxu0
    %v454 = vadd.f32 0.0, %v453
    %455 = vmatmul.bf16.gmra.mxu0 %v202
    %v456 = vpop.f32.mrf.mxu0
    %v457 = vadd.f32 0.0, %v456
    %v458 = vpop.f32.mrf.mxu0
    %v459 = vadd.f32 0.0, %v458
    %460 = vmatmul.bf16.gmra.mxu0 %v203
    %v461 = vpop.f32.mrf.mxu0
    %v462 = vadd.f32 0.0, %v461
    %v463 = vpop.f32.mrf.mxu0
    %v464 = vadd.f32 0.0, %v463
    %465 = vmatmul.bf16.gmra.mxu0 %v204
    %v466 = vpop.f32.mrf.mxu0
    %v467 = vadd.f32 0.0, %v466
    %v468 = vpop.f32.mrf.mxu0
    %v469 = vadd.f32 0.0, %v468
    %470 = vmatmul.bf16.gmra.mxu0 %v205
    %v471 = vpop.f32.mrf.mxu0
    %v472 = vadd.f32 0.0, %v471
    %v473 = vpop.f32.mrf.mxu0
    %v474 = vadd.f32 0.0, %v473
    %475 = vmatmul.bf16.gmra.mxu0 %v206
    %v476 = vpop.f32.mrf.mxu0
    %v477 = vadd.f32 0.0, %v476
    %v478 = vpop.f32.mrf.mxu0
    %v479 = vadd.f32 0.0, %v478
    %480 = vdwg.mxu0
    %v481 = vadd.f32 %v95, %v313
    %v482 = vadd.f32 %v96, %v402
    %v483 = vadd.f32 %v97, %v315
    %v484 = vadd.f32 %v98, %v404
    %v485 = vadd.f32 %v99, %v318
    %v486 = vadd.f32 %v100, %v407
    %v487 = vadd.f32 %v101, %v320
    %v488 = vadd.f32 %v102, %v409
    %v489 = vadd.f32 %v103, %v323
    %v490 = vadd.f32 %v104, %v412
    %v491 = vadd.f32 %v105, %v325
    %v492 = vadd.f32 %v106, %v414
    %v493 = vadd.f32 %v107, %v328
    %v494 = vadd.f32 %v108, %v417
    %v495 = vadd.f32 %v109, %v330
    %v496 = vadd.f32 %v110, %v419
    %v497 = vadd.f32 %v111, %v333
    %v498 = vadd.f32 %v112, %v422
    %v499 = vadd.f32 %v113, %v335
    %v500 = vadd.f32 %v114, %v424
    %v501 = vadd.f32 %v115, %v338
    %v502 = vadd.f32 %v116, %v427
    %v503 = vadd.f32 %v117, %v340
    %v504 = vadd.f32 %v118, %v429
    %v505 = vadd.f32 %v119, %v343
    %v506 = vadd.f32 %v120, %v432
    %v507 = vadd.f32 %v121, %v345
    %v508 = vadd.f32 %v122, %v434
    %v509 = vadd.f32 %v123, %v348
    %v510 = vadd.f32 %v124, %v437
    %v511 = vadd.f32 %v125, %v350
    %v512 = vadd.f32 %v126, %v439
    %v513 = vadd.f32 %v127, %v353
    %v514 = vadd.f32 %v128, %v442
    %v515 = vadd.f32 %v129, %v355
    %v516 = vadd.f32 %v130, %v444
    %v517 = vadd.f32 %v131, %v358
    %v518 = vadd.f32 %v132, %v447
    %v519 = vadd.f32 %v133, %v360
    %v520 = vadd.f32 %v134, %v449
    %v521 = vadd.f32 %v135, %v363
    %v522 = vadd.f32 %v136, %v452
    %v523 = vadd.f32 %v137, %v365
    %v524 = vadd.f32 %v138, %v454
    %v525 = vadd.f32 %v139, %v368
    %v526 = vadd.f32 %v140, %v457
    %v527 = vadd.f32 %v141, %v370
    %v528 = vadd.f32 %v142, %v459
    %v529 = vadd.f32 %v143, %v373
    %v530 = vadd.f32 %v144, %v462
    %v531 = vadd.f32 %v145, %v375
    %v532 = vadd.f32 %v146, %v464
    %v533 = vadd.f32 %v147, %v378
    %v534 = vadd.f32 %v148, %v467
    %v535 = vadd.f32 %v149, %v380
    %v536 = vadd.f32 %v150, %v469
    %v537 = vadd.f32 %v151, %v383
    %v538 = vadd.f32 %v152, %v472
    %v539 = vadd.f32 %v153, %v385
    %v540 = vadd.f32 %v154, %v474
    %v541 = vadd.f32 %v155, %v388
    %v542 = vadd.f32 %v156, %v477
    %v543 = vadd.f32 %v157, %v390
    %v544 = vadd.f32 %v158, %v479
    %545 = vst [vmem:[#allocation2] sm:$0xff] %v481
    %546 = vst [vmem:[#allocation2 + $0x8] sm:$0xff] %v482
    %547 = vst [vmem:[#allocation2 + $0x10] sm:$0xff] %v483
    %548 = vst [vmem:[#allocation2 + $0x18] sm:$0xff] %v484
    %549 = vst [vmem:[#allocation2 + $0x20] sm:$0xff] %v485
    %550 = vst [vmem:[#allocation2 + $0x28] sm:$0xff] %v486
    %551 = vst [vmem:[#allocation2 + $0x30] sm:$0xff] %v487
    %552 = vst [vmem:[#allocation2 + $0x38] sm:$0xff] %v488
    %553 = vst [vmem:[#allocation2 + $0x40] sm:$0xff] %v489
    %554 = vst [vmem:[#allocation2 + $0x48] sm:$0xff] %v490
    %555 = vst [vmem:[#allocation2 + $0x50] sm:$0xff] %v491
    %556 = vst [vmem:[#allocation2 + $0x58] sm:$0xff] %v492
    %557 = vst [vmem:[#allocation2 + $0x60] sm:$0xff] %v493
    %558 = vst [vmem:[#allocation2 + $0x68] sm:$0xff] %v494
    %559 = vst [vmem:[#allocation2 + $0x70] sm:$0xff] %v495
    %560 = vst [vmem:[#allocation2 + $0x78] sm:$0xff] %v496
    %561 = vst [vmem:[#allocation2 + $0x80] sm:$0xff] %v497
    %562 = vst [vmem:[#allocation2 + $0x88] sm:$0xff] %v498
    %563 = vst [vmem:[#allocation2 + $0x90] sm:$0xff] %v499
    %564 = vst [vmem:[#allocation2 + $0x98] sm:$0xff] %v500
    %565 = vst [vmem:[#allocation2 + $0xa0] sm:$0xff] %v501
    %566 = vst [vmem:[#allocation2 + $0xa8] sm:$0xff] %v502
    %567 = vst [vmem:[#allocation2 + $0xb0] sm:$0xff] %v503
    %568 = vst [vmem:[#allocation2 + $0xb8] sm:$0xff] %v504
    %569 = vst [vmem:[#allocation2 + $0xc0] sm:$0xff] %v505
    %570 = vst [vmem:[#allocation2 + $0xc8] sm:$0xff] %v506
    %571 = vst [vmem:[#allocation2 + $0xd0] sm:$0xff] %v507
    %572 = vst [vmem:[#allocation2 + $0xd8] sm:$0xff] %v508
    %573 = vst [vmem:[#allocation2 + $0xe0] sm:$0xff] %v509
    %574 = vst [vmem:[#allocation2 + $0xe8] sm:$0xff] %v510
    %575 = vst [vmem:[#allocation2 + $0xf0] sm:$0xff] %v511
    %576 = vst [vmem:[#allocation2 + $0xf8] sm:$0xff] %v512
    %577 = vst [vmem:[#allocation2 + $0x100] sm:$0xff] %v513
    %578 = vst [vmem:[#allocation2 + $0x108] sm:$0xff] %v514
    %579 = vst [vmem:[#allocation2 + $0x110] sm:$0xff] %v515
    %580 = vst [vmem:[#allocation2 + $0x118] sm:$0xff] %v516
    %581 = vst [vmem:[#allocation2 + $0x120] sm:$0xff] %v517
    %582 = vst [vmem:[#allocation2 + $0x128] sm:$0xff] %v518
    %583 = vst [vmem:[#allocation2 + $0x130] sm:$0xff] %v519
    %584 = vst [vmem:[#allocation2 + $0x138] sm:$0xff] %v520
    %585 = vst [vmem:[#allocation2 + $0x140] sm:$0xff] %v521
    %586 = vst [vmem:[#allocation2 + $0x148] sm:$0xff] %v522
    %587 = vst [vmem:[#allocation2 + $0x150] sm:$0xff] %v523
    %588 = vst [vmem:[#allocation2 + $0x158] sm:$0xff] %v524
    %589 = vst [vmem:[#allocation2 + $0x160] sm:$0xff] %v525
    %590 = vst [vmem:[#allocation2 + $0x168] sm:$0xff] %v526
    %591 = vst [vmem:[#allocation2 + $0x170] sm:$0xff] %v527
    %592 = vst [vmem:[#allocation2 + $0x178] sm:$0xff] %v528
    %593 = vst [vmem:[#allocation2 + $0x180] sm:$0xff] %v529
    %594 = vst [vmem:[#allocation2 + $0x188] sm:$0xff] %v530
    %595 = vst [vmem:[#allocation2 + $0x190] sm:$0xff] %v531
    %596 = vst [vmem:[#allocation2 + $0x198] sm:$0xff] %v532
    %597 = vst [vmem:[#allocation2 + $0x1a0] sm:$0xff] %v533
    %598 = vst [vmem:[#allocation2 + $0x1a8] sm:$0xff] %v534
    %599 = vst [vmem:[#allocation2 + $0x1b0] sm:$0xff] %v535
    %600 = vst [vmem:[#allocation2 + $0x1b8] sm:$0xff] %v536
    %601 = vst [vmem:[#allocation2 + $0x1c0] sm:$0xff] %v537
    %602 = vst [vmem:[#allocation2 + $0x1c8] sm:$0xff] %v538
    %603 = vst [vmem:[#allocation2 + $0x1d0] sm:$0xff] %v539
    %604 = vst [vmem:[#allocation2 + $0x1d8] sm:$0xff] %v540
    %605 = vst [vmem:[#allocation2 + $0x1e0] sm:$0xff] %v541
    %606 = vst [vmem:[#allocation2 + $0x1e8] sm:$0xff] %v542
    %607 = vst [vmem:[#allocation2 + $0x1f0] sm:$0xff] %v543
    %608 = vst [vmem:[#allocation2 + $0x1f8] sm:$0xff] %v544
    // Predicated region
    $region18: #{graph_convolution_bs_forward.3} parent=1 // pred_check
      %p609 = pneg %p27
    $region19: #{graph_convolution_bs_forward.3} parent=1 // pred_check_branch
      %611 = sbr.rel (%p609) target = $region21
    $region20: #{graph_convolution_bs_forward.3} parent=1 // pred_region
      %v612 = vld [vmem:[#allocation2] sm:$0xff]
      %v613 = vld [vmem:[#allocation2 + $0x8] sm:$0xff]
      %v614 = vld [vmem:[#allocation2 + $0x10] sm:$0xff]
      %v615 = vld [vmem:[#allocation2 + $0x18] sm:$0xff]
      %v616 = vld [vmem:[#allocation2 + $0x20] sm:$0xff]
      %v617 = vld [vmem:[#allocation2 + $0x28] sm:$0xff]
      %v618 = vld [vmem:[#allocation2 + $0x30] sm:$0xff]
      %v619 = vld [vmem:[#allocation2 + $0x38] sm:$0xff]
      %v620 = vld [vmem:[#allocation2 + $0x40] sm:$0xff]
      %v621 = vld [vmem:[#allocation2 + $0x48] sm:$0xff]
      %v622 = vld [vmem:[#allocation2 + $0x50] sm:$0xff]
      %v623 = vld [vmem:[#allocation2 + $0x58] sm:$0xff]
      %v624 = vld [vmem:[#allocation2 + $0x60] sm:$0xff]
      %v625 = vld [vmem:[#allocation2 + $0x68] sm:$0xff]
      %v626 = vld [vmem:[#allocation2 + $0x70] sm:$0xff]
      %v627 = vld [vmem:[#allocation2 + $0x78] sm:$0xff]
      %v628 = vld [vmem:[#allocation2 + $0x80] sm:$0xff]
      %v629 = vld [vmem:[#allocation2 + $0x88] sm:$0xff]
      %v630 = vld [vmem:[#allocation2 + $0x90] sm:$0xff]
      %v631 = vld [vmem:[#allocation2 + $0x98] sm:$0xff]
      %v632 = vld [vmem:[#allocation2 + $0xa0] sm:$0xff]
      %v633 = vld [vmem:[#allocation2 + $0xa8] sm:$0xff]
      %v634 = vld [vmem:[#allocation2 + $0xb0] sm:$0xff]
      %v635 = vld [vmem:[#allocation2 + $0xb8] sm:$0xff]
      %v636 = vld [vmem:[#allocation2 + $0xc0] sm:$0xff]
      %v637 = vld [vmem:[#allocation2 + $0xc8] sm:$0xff]
      %v638 = vld [vmem:[#allocation2 + $0xd0] sm:$0xff]
      %v639 = vld [vmem:[#allocation2 + $0xd8] sm:$0xff]
      %v640 = vld [vmem:[#allocation2 + $0xe0] sm:$0xff]
      %v641 = vld [vmem:[#allocation2 + $0xe8] sm:$0xff]
      %v642 = vld [vmem:[#allocation2 + $0xf0] sm:$0xff]
      %v643 = vld [vmem:[#allocation2 + $0xf8] sm:$0xff]
      %v644 = vld [vmem:[#allocation2 + $0x100] sm:$0xff]
      %v645 = vld [vmem:[#allocation2 + $0x108] sm:$0xff]
      %v646 = vld [vmem:[#allocation2 + $0x110] sm:$0xff]
      %v647 = vld [vmem:[#allocation2 + $0x118] sm:$0xff]
      %v648 = vld [vmem:[#allocation2 + $0x120] sm:$0xff]
      %v649 = vld [vmem:[#allocation2 + $0x128] sm:$0xff]
      %v650 = vld [vmem:[#allocation2 + $0x130] sm:$0xff]
      %v651 = vld [vmem:[#allocation2 + $0x138] sm:$0xff]
      %v652 = vld [vmem:[#allocation2 + $0x140] sm:$0xff]
      %v653 = vld [vmem:[#allocation2 + $0x148] sm:$0xff]
      %v654 = vld [vmem:[#allocation2 + $0x150] sm:$0xff]
      %v655 = vld [vmem:[#allocation2 + $0x158] sm:$0xff]
      %v656 = vld [vmem:[#allocation2 + $0x160] sm:$0xff]
      %v657 = vld [vmem:[#allocation2 + $0x168] sm:$0xff]
      %v658 = vld [vmem:[#allocation2 + $0x170] sm:$0xff]
      %v659 = vld [vmem:[#allocation2 + $0x178] sm:$0xff]
      %v660 = vld [vmem:[#allocation2 + $0x180] sm:$0xff]
      %v661 = vld [vmem:[#allocation2 + $0x188] sm:$0xff]
      %v662 = vld [vmem:[#allocation2 + $0x190] sm:$0xff]
      %v663 = vld [vmem:[#allocation2 + $0x198] sm:$0xff]
      %v664 = vld [vmem:[#allocation2 + $0x1a0] sm:$0xff]
      %v665 = vld [vmem:[#allocation2 + $0x1a8] sm:$0xff]
      %v666 = vld [vmem:[#allocation2 + $0x1b0] sm:$0xff]
      %v667 = vld [vmem:[#allocation2 + $0x1b8] sm:$0xff]
      %v668 = vld [vmem:[#allocation2 + $0x1c0] sm:$0xff]
      %v669 = vld [vmem:[#allocation2 + $0x1c8] sm:$0xff]
      %v670 = vld [vmem:[#allocation2 + $0x1d0] sm:$0xff]
      %v671 = vld [vmem:[#allocation2 + $0x1d8] sm:$0xff]
      %v672 = vld [vmem:[#allocation2 + $0x1e0] sm:$0xff]
      %v673 = vld [vmem:[#allocation2 + $0x1e8] sm:$0xff]
      %v674 = vld [vmem:[#allocation2 + $0x1f0] sm:$0xff]
      %v675 = vld [vmem:[#allocation2 + $0x1f8] sm:$0xff]
      %v676 = vpack.c.bf16 %v613, %v612
      %v677 = vpack.c.bf16 %v615, %v614
      %v678 = vpack.c.bf16 %v617, %v616
      %v679 = vpack.c.bf16 %v619, %v618
      %v680 = vpack.c.bf16 %v621, %v620
      %v681 = vpack.c.bf16 %v623, %v622
      %v682 = vpack.c.bf16 %v625, %v624
      %v683 = vpack.c.bf16 %v627, %v626
      %v684 = vpack.c.bf16 %v629, %v628
      %v685 = vpack.c.bf16 %v631, %v630
      %v686 = vpack.c.bf16 %v633, %v632
      %v687 = vpack.c.bf16 %v635, %v634
      %v688 = vpack.c.bf16 %v637, %v636
      %v689 = vpack.c.bf16 %v639, %v638
      %v690 = vpack.c.bf16 %v641, %v640
      %v691 = vpack.c.bf16 %v643, %v642
      %v692 = vpack.c.bf16 %v645, %v644
      %v693 = vpack.c.bf16 %v647, %v646
      %v694 = vpack.c.bf16 %v649, %v648
      %v695 = vpack.c.bf16 %v651, %v650
      %v696 = vpack.c.bf16 %v653, %v652
      %v697 = vpack.c.bf16 %v655, %v654
      %v698 = vpack.c.bf16 %v657, %v656
      %v699 = vpack.c.bf16 %v659, %v658
      %v700 = vpack.c.bf16 %v661, %v660
      %v701 = vpack.c.bf16 %v663, %v662
      %v702 = vpack.c.bf16 %v665, %v664
      %v703 = vpack.c.bf16 %v667, %v666
      %v704 = vpack.c.bf16 %v669, %v668
      %v705 = vpack.c.bf16 %v671, %v670
      %v706 = vpack.c.bf16 %v673, %v672
      %v707 = vpack.c.bf16 %v675, %v674
      %708 = vst [vmem:[%s2] sm:$0xff] %v676
      %709 = vst [vmem:[%s2 + $0x8] sm:$0xff] %v677
      %710 = vst [vmem:[%s2 + $0x10] sm:$0xff] %v678
      %711 = vst [vmem:[%s2 + $0x18] sm:$0xff] %v679
      %712 = vst [vmem:[%s2 + $0x20] sm:$0xff] %v680
      %713 = vst [vmem:[%s2 + $0x28] sm:$0xff] %v681
      %714 = vst [vmem:[%s2 + $0x30] sm:$0xff] %v682
      %715 = vst [vmem:[%s2 + $0x38] sm:$0xff] %v683
      %716 = vst [vmem:[%s2 + $0x40] sm:$0xff] %v684
      %717 = vst [vmem:[%s2 + $0x48] sm:$0xff] %v685
      %718 = vst [vmem:[%s2 + $0x50] sm:$0xff] %v686
      %719 = vst [vmem:[%s2 + $0x58] sm:$0xff] %v687
      %720 = vst [vmem:[%s2 + $0x60] sm:$0xff] %v688
      %721 = vst [vmem:[%s2 + $0x68] sm:$0xff] %v689
      %722 = vst [vmem:[%s2 + $0x70] sm:$0xff] %v690
      %723 = vst [vmem:[%s2 + $0x78] sm:$0xff] %v691
      %724 = vst [vmem:[%s2 + $0x80] sm:$0xff] %v692
      %725 = vst [vmem:[%s2 + $0x88] sm:$0xff] %v693
      %726 = vst [vmem:[%s2 + $0x90] sm:$0xff] %v694
      %727 = vst [vmem:[%s2 + $0x98] sm:$0xff] %v695
      %728 = vst [vmem:[%s2 + $0xa0] sm:$0xff] %v696
      %729 = vst [vmem:[%s2 + $0xa8] sm:$0xff] %v697
      %730 = vst [vmem:[%s2 + $0xb0] sm:$0xff] %v698
      %731 = vst [vmem:[%s2 + $0xb8] sm:$0xff] %v699
      %732 = vst [vmem:[%s2 + $0xc0] sm:$0xff] %v700
      %733 = vst [vmem:[%s2 + $0xc8] sm:$0xff] %v701
      %734 = vst [vmem:[%s2 + $0xd0] sm:$0xff] %v702
      %735 = vst [vmem:[%s2 + $0xd8] sm:$0xff] %v703
      %736 = vst [vmem:[%s2 + $0xe0] sm:$0xff] %v704
      %737 = vst [vmem:[%s2 + $0xe8] sm:$0xff] %v705
      %738 = vst [vmem:[%s2 + $0xf0] sm:$0xff] %v706
      %739 = vst [vmem:[%s2 + $0xf8] sm:$0xff] %v707
    $region21: #{graph_convolution_bs_forward.3} parent=1 // pred_fallthru
      _
    // Predicated region
    $region22: #{graph_convolution_bs_forward.3} parent=1 // pred_check
      _
    $region23: #{graph_convolution_bs_forward.3} parent=1 // pred_check_branch
      %741 = sbr.rel (0) target = $region25
    $region24: #{graph_convolution_bs_forward.3} parent=1 // pred_region
      _
    $region25: #{graph_convolution_bs_forward.3} parent=1 // pred_fallthru
      _
    // Predicated region
    $region26: #{graph_convolution_bs_forward.3} parent=1 // pred_check
      _
    $region27: #{graph_convolution_bs_forward.3} parent=1 // pred_check_branch
      %743 = sbr.rel (0) target = $region29
    $region28: #{graph_convolution_bs_forward.3} parent=1 // pred_region
      _
    $region29: #{graph_convolution_bs_forward.3} parent=1 // pred_fallthru
      _
    %744 = vsyncpa [#allocation4], 1

// kernel: graph_convolution_bs_forward.4
$region0: #{graph_convolution_bs_forward.4}
  #allocation0 [shape = 'u32[]', space=smem, size = 0x4, offset = 0x4, fixed_abs, tag = 'smem constant byte address 0x4 - core index']
  #allocation1 [shape = 'u32[72,128]{1,0:T(1,128)}', space=vmem, size = 0x9000, scoped, tag = 'internal scratch']
  %s0 = inlined_call_operand.vmem [shape: f32[256,256], index: 0, kind: input, shape index: {}]
  %s1 = inlined_call_operand.vmem [shape: bf16[256,256], index: 1, kind: input, shape index: {}, may-alias: {1,2}]
  %s2 = inlined_call_operand.vmem [shape: bf16[256,256], index: 2, kind: input, shape index: {}, may-alias: {1,2}]
  %s3 = inlined_call_operand.hbm [shape: f32[256,128], index: 3, kind: output, shape index: {0}]
  %s4 = inlined_call_operand.vmem [shape: f32[1,1,128], index: 4, kind: output, shape index: {1}]
  %s5 = inlined_call_operand.vmem [shape: f32[1,1,128], index: 5, kind: output, shape index: {2}]
  %6 = xla_tuple %s3, %s4, %s5
  %s7 = sld [smem:[#allocation0]]
  $region128: #{graph_convolution_bs_forward.4} parent=0
    _
  %s9 = ssub.s32 1, %s7
  %s10 = scalar_select 0, %s9, %s7
  $region1: #{graph_convolution_bs_forward.4} parent=0
    #allocation2 [shape = 'u8[65536]{0}', space=vmem, size = 0x10000, scoped, tag = 'input window, operand 1, single buffered']
    #allocation3 [shape = 'u8[65536]{0}', space=vmem, size = 0x10000, scoped, tag = 'input window, operand 2, single buffered']
    #allocation4 [shape = 'u8[131072]{0}', space=vmem, size = 0x20000, scoped, tag = 'output window, operand 0, single buffered']
    #allocation5 [shape = 's32[1]{0}', space=sflag, size = 0x4, scoped, tag = 'scoped memory for graph_convolution_bs_forward.4']
    %11 = vsyncpa [#allocation5], 0
    // Predicated region
    $region2: #{graph_convolution_bs_forward.4} parent=1 // pred_check
      _
    $region3: #{graph_convolution_bs_forward.4} parent=1 // pred_check_branch
      %13 = sbr.rel (0) target = $region5
    $region4: #{graph_convolution_bs_forward.4} parent=1 // pred_region
      _
    $region5: #{graph_convolution_bs_forward.4} parent=1 // pred_fallthru
      _
    // Predicated region
    $region6: #{graph_convolution_bs_forward.4} parent=1 // pred_check
      _
    $region7: #{graph_convolution_bs_forward.4} parent=1 // pred_check_branch
      %15 = sbr.rel (0) target = $region9
    $region8: #{graph_convolution_bs_forward.4} parent=1 // pred_region
      // Predicated region
      $region10: #{graph_convolution_bs_forward.4} parent=8 // pred_check
        _
      $region11: #{graph_convolution_bs_forward.4} parent=8 // pred_check_branch
        %17 = sbr.rel (0) target = $region13
      $region12: #{graph_convolution_bs_forward.4} parent=8 // pred_region
        // Predicated region
        $region14: #{graph_convolution_bs_forward.4} parent=12 // pred_check
          _
        $region15: #{graph_convolution_bs_forward.4} parent=12 // pred_check_branch
          %19 = sbr.rel target = $region17
        $region16: #{graph_convolution_bs_forward.4} parent=12 // pred_region
          // Predicated region
          $region29: #{graph_convolution_bs_forward.4} parent=16 // pred_check
            _
          $region30: #{graph_convolution_bs_forward.4} parent=16 // pred_check_branch
            %97 = sbr.rel (0) target = $region32
          $region31: #{graph_convolution_bs_forward.4} parent=16 // pred_region
            loop: start=0, step=1, limit=1
            $region33: #{graph_convolution_bs_forward.4} parent=31 // loop_pre_header
              _
            $region34: #{graph_convolution_bs_forward.4} parent=31 // loop_header
              %s99 = sphi 0, %s103
              %p100 = scmp.ge.s32.totalorder %s99, 1
              %s104 = sphi %s1, %s1
              %s105 = sphi [#allocation2], [#allocation2]
            $region35: #{graph_convolution_bs_forward.4} parent=31 // loop_header_branch
              %102 = sbr.rel (%p100) target = $region39
            $region36: #{graph_convolution_bs_forward.4} parent=31 // loop_body
              _
            $region37: #{graph_convolution_bs_forward.4} parent=31 // loop_footer
              %s103 = sadd.s32 1, %s99
            $region38: #{graph_convolution_bs_forward.4} parent=31 // loop_footer_branch
              %98 = sbr.rel target = $region34
            $region39: #{graph_convolution_bs_forward.4} parent=31 // loop_exit
              _
            %s107 = ssub.s32 16, 1
            loop: start=0, step=1, limit=1
            $region40: #{graph_convolution_bs_forward.4} parent=31 // loop_pre_header
              _
            $region41: #{graph_convolution_bs_forward.4} parent=31 // loop_header
              %s109 = sphi 0, %s113
              %p110 = scmp.ge.s32.totalorder %s109, 1
              %s114 = sphi %s1, %s1
              %s115 = sphi [#allocation2], [#allocation2]
            $region42: #{graph_convolution_bs_forward.4} parent=31 // loop_header_branch
              %112 = sbr.rel (%p110) target = $region46
            $region43: #{graph_convolution_bs_forward.4} parent=31 // loop_body
              %v116 = vld [vmem:[%s114] sm:%s107]
              %117 = vst [vmem:[%s115] sm:%s107] %v116
              %v118 = vld [vmem:[%s114 + $0x8] sm:%s107]
              %119 = vst [vmem:[%s115 + $0x4] sm:%s107] %v118
              %v120 = vld [vmem:[%s114 + $0x10] sm:%s107]
              %121 = vst [vmem:[%s115 + $0x8] sm:%s107] %v120
              %v122 = vld [vmem:[%s114 + $0x18] sm:%s107]
              %123 = vst [vmem:[%s115 + $0xc] sm:%s107] %v122
              %v124 = vld [vmem:[%s114 + $0x20] sm:%s107]
              %125 = vst [vmem:[%s115 + $0x10] sm:%s107] %v124
              %v126 = vld [vmem:[%s114 + $0x28] sm:%s107]
              %127 = vst [vmem:[%s115 + $0x14] sm:%s107] %v126
              %v128 = vld [vmem:[%s114 + $0x30] sm:%s107]
              %129 = vst [vmem:[%s115 + $0x18] sm:%s107] %v128
              %v130 = vld [vmem:[%s114 + $0x38] sm:%s107]
              %131 = vst [vmem:[%s115 + $0x1c] sm:%s107] %v130
              %v132 = vld [vmem:[%s114 + $0x40] sm:%s107]
              %133 = vst [vmem:[%s115 + $0x20] sm:%s107] %v132
              %v134 = vld [vmem:[%s114 + $0x48] sm:%s107]
              %135 = vst [vmem:[%s115 + $0x24] sm:%s107] %v134
              %v136 = vld [vmem:[%s114 + $0x50] sm:%s107]
              %137 = vst [vmem:[%s115 + $0x28] sm:%s107] %v136
              %v138 = vld [vmem:[%s114 + $0x58] sm:%s107]
              %139 = vst [vmem:[%s115 + $0x2c] sm:%s107] %v138
              %v140 = vld [vmem:[%s114 + $0x60] sm:%s107]
              %141 = vst [vmem:[%s115 + $0x30] sm:%s107] %v140
              %v142 = vld [vmem:[%s114 + $0x68] sm:%s107]
              %143 = vst [vmem:[%s115 + $0x34] sm:%s107] %v142
              %v144 = vld [vmem:[%s114 + $0x70] sm:%s107]
              %145 = vst [vmem:[%s115 + $0x38] sm:%s107] %v144
              %v146 = vld [vmem:[%s114 + $0x78] sm:%s107]
              %147 = vst [vmem:[%s115 + $0x3c] sm:%s107] %v146
              %v148 = vld [vmem:[%s114 + $0x80] sm:%s107]
              %149 = vst [vmem:[%s115 + $0x40] sm:%s107] %v148
              %v150 = vld [vmem:[%s114 + $0x88] sm:%s107]
              %151 = vst [vmem:[%s115 + $0x44] sm:%s107] %v150
              %v152 = vld [vmem:[%s114 + $0x90] sm:%s107]
              %153 = vst [vmem:[%s115 + $0x48] sm:%s107] %v152
              %v154 = vld [vmem:[%s114 + $0x98] sm:%s107]
              %155 = vst [vmem:[%s115 + $0x4c] sm:%s107] %v154
              %v156 = vld [vmem:[%s114 + $0xa0] sm:%s107]
              %157 = vst [vmem:[%s115 + $0x50] sm:%s107] %v156
              %v158 = vld [vmem:[%s114 + $0xa8] sm:%s107]
              %159 = vst [vmem:[%s115 + $0x54] sm:%s107] %v158
              %v160 = vld [vmem:[%s114 + $0xb0] sm:%s107]
              %161 = vst [vmem:[%s115 + $0x58] sm:%s107] %v160
              %v162 = vld [vmem:[%s114 + $0xb8] sm:%s107]
              %163 = vst [vmem:[%s115 + $0x5c] sm:%s107] %v162
              %v164 = vld [vmem:[%s114 + $0xc0] sm:%s107]
              %165 = vst [vmem:[%s115 + $0x60] sm:%s107] %v164
              %v166 = vld [vmem:[%s114 + $0xc8] sm:%s107]
              %167 = vst [vmem:[%s115 + $0x64] sm:%s107] %v166
              %v168 = vld [vmem:[%s114 + $0xd0] sm:%s107]
              %169 = vst [vmem:[%s115 + $0x68] sm:%s107] %v168
              %v170 = vld [vmem:[%s114 + $0xd8] sm:%s107]
              %171 = vst [vmem:[%s115 + $0x6c] sm:%s107] %v170
              %v172 = vld [vmem:[%s114 + $0xe0] sm:%s107]
              %173 = vst [vmem:[%s115 + $0x70] sm:%s107] %v172
              %v174 = vld [vmem:[%s114 + $0xe8] sm:%s107]
              %175 = vst [vmem:[%s115 + $0x74] sm:%s107] %v174
              %v176 = vld [vmem:[%s114 + $0xf0] sm:%s107]
              %177 = vst [vmem:[%s115 + $0x78] sm:%s107] %v176
              %v178 = vld [vmem:[%s114 + $0xf8] sm:%s107]
              %179 = vst [vmem:[%s115 + $0x7c] sm:%s107] %v178
            $region44: #{graph_convolution_bs_forward.4} parent=31 // loop_footer
              %s113 = sadd.s32 1, %s109
            $region45: #{graph_convolution_bs_forward.4} parent=31 // loop_footer_branch
              %108 = sbr.rel target = $region41
            $region46: #{graph_convolution_bs_forward.4} parent=31 // loop_exit
              _
          $region32: #{graph_convolution_bs_forward.4} parent=16 // pred_fallthru
            _
        $region17: #{graph_convolution_bs_forward.4} parent=12 // pred_fallthru
          _
        // Predicated region
        $region18: #{graph_convolution_bs_forward.4} parent=12 // pred_check
          _
        $region19: #{graph_convolution_bs_forward.4} parent=12 // pred_check_branch
          %21 = sbr.rel (0) target = $region21
        $region20: #{graph_convolution_bs_forward.4} parent=12 // pred_region
          %s23 = ssub.s32 16, 1
          loop: start=0, step=1, limit=1
          $region22: #{graph_convolution_bs_forward.4} parent=20 // loop_pre_header
            _
          $region23: #{graph_convolution_bs_forward.4} parent=20 // loop_header
            %s25 = sphi 0, %s29
            %p26 = scmp.ge.s32.totalorder %s25, 1
            %s30 = sphi %s1, %s1
            %s31 = sphi [#allocation2], [#allocation2]
          $region24: #{graph_convolution_bs_forward.4} parent=20 // loop_header_branch
            %28 = sbr.rel (%p26) target = $region28
          $region25: #{graph_convolution_bs_forward.4} parent=20 // loop_body
            %v32 = vld [vmem:[%s30] sm:%s23]
            %33 = vst [vmem:[%s31] sm:%s23] %v32
            %v34 = vld [vmem:[%s30 + $0x8] sm:%s23]
            %35 = vst [vmem:[%s31 + $0x4] sm:%s23] %v34
            %v36 = vld [vmem:[%s30 + $0x10] sm:%s23]
            %37 = vst [vmem:[%s31 + $0x8] sm:%s23] %v36
            %v38 = vld [vmem:[%s30 + $0x18] sm:%s23]
            %39 = vst [vmem:[%s31 + $0xc] sm:%s23] %v38
            %v40 = vld [vmem:[%s30 + $0x20] sm:%s23]
            %41 = vst [vmem:[%s31 + $0x10] sm:%s23] %v40
            %v42 = vld [vmem:[%s30 + $0x28] sm:%s23]
            %43 = vst [vmem:[%s31 + $0x14] sm:%s23] %v42
            %v44 = vld [vmem:[%s30 + $0x30] sm:%s23]
            %45 = vst [vmem:[%s31 + $0x18] sm:%s23] %v44
            %v46 = vld [vmem:[%s30 + $0x38] sm:%s23]
            %47 = vst [vmem:[%s31 + $0x1c] sm:%s23] %v46
            %v48 = vld [vmem:[%s30 + $0x40] sm:%s23]
            %49 = vst [vmem:[%s31 + $0x20] sm:%s23] %v48
            %v50 = vld [vmem:[%s30 + $0x48] sm:%s23]
            %51 = vst [vmem:[%s31 + $0x24] sm:%s23] %v50
            %v52 = vld [vmem:[%s30 + $0x50] sm:%s23]
            %53 = vst [vmem:[%s31 + $0x28] sm:%s23] %v52
            %v54 = vld [vmem:[%s30 + $0x58] sm:%s23]
            %55 = vst [vmem:[%s31 + $0x2c] sm:%s23] %v54
            %v56 = vld [vmem:[%s30 + $0x60] sm:%s23]
            %57 = vst [vmem:[%s31 + $0x30] sm:%s23] %v56
            %v58 = vld [vmem:[%s30 + $0x68] sm:%s23]
            %59 = vst [vmem:[%s31 + $0x34] sm:%s23] %v58
            %v60 = vld [vmem:[%s30 + $0x70] sm:%s23]
            %61 = vst [vmem:[%s31 + $0x38] sm:%s23] %v60
            %v62 = vld [vmem:[%s30 + $0x78] sm:%s23]
            %63 = vst [vmem:[%s31 + $0x3c] sm:%s23] %v62
            %v64 = vld [vmem:[%s30 + $0x80] sm:%s23]
            %65 = vst [vmem:[%s31 + $0x40] sm:%s23] %v64
            %v66 = vld [vmem:[%s30 + $0x88] sm:%s23]
            %67 = vst [vmem:[%s31 + $0x44] sm:%s23] %v66
            %v68 = vld [vmem:[%s30 + $0x90] sm:%s23]
            %69 = vst [vmem:[%s31 + $0x48] sm:%s23] %v68
            %v70 = vld [vmem:[%s30 + $0x98] sm:%s23]
            %71 = vst [vmem:[%s31 + $0x4c] sm:%s23] %v70
            %v72 = vld [vmem:[%s30 + $0xa0] sm:%s23]
            %73 = vst [vmem:[%s31 + $0x50] sm:%s23] %v72
            %v74 = vld [vmem:[%s30 + $0xa8] sm:%s23]
            %75 = vst [vmem:[%s31 + $0x54] sm:%s23] %v74
            %v76 = vld [vmem:[%s30 + $0xb0] sm:%s23]
            %77 = vst [vmem:[%s31 + $0x58] sm:%s23] %v76
            %v78 = vld [vmem:[%s30 + $0xb8] sm:%s23]
            %79 = vst [vmem:[%s31 + $0x5c] sm:%s23] %v78
            %v80 = vld [vmem:[%s30 + $0xc0] sm:%s23]
            %81 = vst [vmem:[%s31 + $0x60] sm:%s23] %v80
            %v82 = vld [vmem:[%s30 + $0xc8] sm:%s23]
            %83 = vst [vmem:[%s31 + $0x64] sm:%s23] %v82
            %v84 = vld [vmem:[%s30 + $0xd0] sm:%s23]
            %85 = vst [vmem:[%s31 + $0x68] sm:%s23] %v84
            %v86 = vld [vmem:[%s30 + $0xd8] sm:%s23]
            %87 = vst [vmem:[%s31 + $0x6c] sm:%s23] %v86
            %v88 = vld [vmem:[%s30 + $0xe0] sm:%s23]
            %89 = vst [vmem:[%s31 + $0x70] sm:%s23] %v88
            %v90 = vld [vmem:[%s30 + $0xe8] sm:%s23]
            %91 = vst [vmem:[%s31 + $0x74] sm:%s23] %v90
            %v92 = vld [vmem:[%s30 + $0xf0] sm:%s23]
            %93 = vst [vmem:[%s31 + $0x78] sm:%s23] %v92
            %v94 = vld [vmem:[%s30 + $0xf8] sm:%s23]
            %95 = vst [vmem:[%s31 + $0x7c] sm:%s23] %v94
          $region26: #{graph_convolution_bs_forward.4} parent=20 // loop_footer
            %s29 = sadd.s32 1, %s25
          $region27: #{graph_convolution_bs_forward.4} parent=20 // loop_footer_branch
            %24 = sbr.rel target = $region23
          $region28: #{graph_convolution_bs_forward.4} parent=20 // loop_exit
            _
        $region21: #{graph_convolution_bs_forward.4} parent=12 // pred_fallthru
          _
      $region13: #{graph_convolution_bs_forward.4} parent=8 // pred_fallthru
        _
      %180 = vnop
    $region9: #{graph_convolution_bs_forward.4} parent=1 // pred_fallthru
      _
    // Predicated region
    $region47: #{graph_convolution_bs_forward.4} parent=1 // pred_check
      _
    $region48: #{graph_convolution_bs_forward.4} parent=1 // pred_check_branch
      %182 = sbr.rel (0) target = $region50
    $region49: #{graph_convolution_bs_forward.4} parent=1 // pred_region
      %s183 = scalar_lea.vmem %s2, 4
      // Predicated region
      $region51: #{graph_convolution_bs_forward.4} parent=49 // pred_check
        _
      $region52: #{graph_convolution_bs_forward.4} parent=49 // pred_check_branch
        %185 = sbr.rel (0) target = $region54
      $region53: #{graph_convolution_bs_forward.4} parent=49 // pred_region
        // Predicated region
        $region55: #{graph_convolution_bs_forward.4} parent=53 // pred_check
          _
        $region56: #{graph_convolution_bs_forward.4} parent=53 // pred_check_branch
          %187 = sbr.rel target = $region58
        $region57: #{graph_convolution_bs_forward.4} parent=53 // pred_region
          // Predicated region
          $region70: #{graph_convolution_bs_forward.4} parent=57 // pred_check
            _
          $region71: #{graph_convolution_bs_forward.4} parent=57 // pred_check_branch
            %265 = sbr.rel (0) target = $region73
          $region72: #{graph_convolution_bs_forward.4} parent=57 // pred_region
            loop: start=0, step=1, limit=1
            $region74: #{graph_convolution_bs_forward.4} parent=72 // loop_pre_header
              _
            $region75: #{graph_convolution_bs_forward.4} parent=72 // loop_header
              %s267 = sphi 0, %s271
              %p268 = scmp.ge.s32.totalorder %s267, 1
              %s272 = sphi %s183, %s183
              %s273 = sphi [#allocation3], [#allocation3]
            $region76: #{graph_convolution_bs_forward.4} parent=72 // loop_header_branch
              %270 = sbr.rel (%p268) target = $region80
            $region77: #{graph_convolution_bs_forward.4} parent=72 // loop_body
              _
            $region78: #{graph_convolution_bs_forward.4} parent=72 // loop_footer
              %s271 = sadd.s32 1, %s267
            $region79: #{graph_convolution_bs_forward.4} parent=72 // loop_footer_branch
              %266 = sbr.rel target = $region75
            $region80: #{graph_convolution_bs_forward.4} parent=72 // loop_exit
              _
            %s275 = ssub.s32 16, 1
            loop: start=0, step=1, limit=1
            $region81: #{graph_convolution_bs_forward.4} parent=72 // loop_pre_header
              _
            $region82: #{graph_convolution_bs_forward.4} parent=72 // loop_header
              %s277 = sphi 0, %s281
              %p278 = scmp.ge.s32.totalorder %s277, 1
              %s282 = sphi %s183, %s183
              %s283 = sphi [#allocation3], [#allocation3]
            $region83: #{graph_convolution_bs_forward.4} parent=72 // loop_header_branch
              %280 = sbr.rel (%p278) target = $region87
            $region84: #{graph_convolution_bs_forward.4} parent=72 // loop_body
              %v284 = vld [vmem:[%s282] sm:%s275]
              %285 = vst [vmem:[%s283] sm:%s275] %v284
              %v286 = vld [vmem:[%s282 + $0x8] sm:%s275]
              %287 = vst [vmem:[%s283 + $0x4] sm:%s275] %v286
              %v288 = vld [vmem:[%s282 + $0x10] sm:%s275]
              %289 = vst [vmem:[%s283 + $0x8] sm:%s275] %v288
              %v290 = vld [vmem:[%s282 + $0x18] sm:%s275]
              %291 = vst [vmem:[%s283 + $0xc] sm:%s275] %v290
              %v292 = vld [vmem:[%s282 + $0x20] sm:%s275]
              %293 = vst [vmem:[%s283 + $0x10] sm:%s275] %v292
              %v294 = vld [vmem:[%s282 + $0x28] sm:%s275]
              %295 = vst [vmem:[%s283 + $0x14] sm:%s275] %v294
              %v296 = vld [vmem:[%s282 + $0x30] sm:%s275]
              %297 = vst [vmem:[%s283 + $0x18] sm:%s275] %v296
              %v298 = vld [vmem:[%s282 + $0x38] sm:%s275]
              %299 = vst [vmem:[%s283 + $0x1c] sm:%s275] %v298
              %v300 = vld [vmem:[%s282 + $0x40] sm:%s275]
              %301 = vst [vmem:[%s283 + $0x20] sm:%s275] %v300
              %v302 = vld [vmem:[%s282 + $0x48] sm:%s275]
              %303 = vst [vmem:[%s283 + $0x24] sm:%s275] %v302
              %v304 = vld [vmem:[%s282 + $0x50] sm:%s275]
              %305 = vst [vmem:[%s283 + $0x28] sm:%s275] %v304
              %v306 = vld [vmem:[%s282 + $0x58] sm:%s275]
              %307 = vst [vmem:[%s283 + $0x2c] sm:%s275] %v306
              %v308 = vld [vmem:[%s282 + $0x60] sm:%s275]
              %309 = vst [vmem:[%s283 + $0x30] sm:%s275] %v308
              %v310 = vld [vmem:[%s282 + $0x68] sm:%s275]
              %311 = vst [vmem:[%s283 + $0x34] sm:%s275] %v310
              %v312 = vld [vmem:[%s282 + $0x70] sm:%s275]
              %313 = vst [vmem:[%s283 + $0x38] sm:%s275] %v312
              %v314 = vld [vmem:[%s282 + $0x78] sm:%s275]
              %315 = vst [vmem:[%s283 + $0x3c] sm:%s275] %v314
              %v316 = vld [vmem:[%s282 + $0x80] sm:%s275]
              %317 = vst [vmem:[%s283 + $0x40] sm:%s275] %v316
              %v318 = vld [vmem:[%s282 + $0x88] sm:%s275]
              %319 = vst [vmem:[%s283 + $0x44] sm:%s275] %v318
              %v320 = vld [vmem:[%s282 + $0x90] sm:%s275]
              %321 = vst [vmem:[%s283 + $0x48] sm:%s275] %v320
              %v322 = vld [vmem:[%s282 + $0x98] sm:%s275]
              %323 = vst [vmem:[%s283 + $0x4c] sm:%s275] %v322
              %v324 = vld [vmem:[%s282 + $0xa0] sm:%s275]
              %325 = vst [vmem:[%s283 + $0x50] sm:%s275] %v324
              %v326 = vld [vmem:[%s282 + $0xa8] sm:%s275]
              %327 = vst [vmem:[%s283 + $0x54] sm:%s275] %v326
              %v328 = vld [vmem:[%s282 + $0xb0] sm:%s275]
              %329 = vst [vmem:[%s283 + $0x58] sm:%s275] %v328
              %v330 = vld [vmem:[%s282 + $0xb8] sm:%s275]
              %331 = vst [vmem:[%s283 + $0x5c] sm:%s275] %v330
              %v332 = vld [vmem:[%s282 + $0xc0] sm:%s275]
              %333 = vst [vmem:[%s283 + $0x60] sm:%s275] %v332
              %v334 = vld [vmem:[%s282 + $0xc8] sm:%s275]
              %335 = vst [vmem:[%s283 + $0x64] sm:%s275] %v334
              %v336 = vld [vmem:[%s282 + $0xd0] sm:%s275]
              %337 = vst [vmem:[%s283 + $0x68] sm:%s275] %v336
              %v338 = vld [vmem:[%s282 + $0xd8] sm:%s275]
              %339 = vst [vmem:[%s283 + $0x6c] sm:%s275] %v338
              %v340 = vld [vmem:[%s282 + $0xe0] sm:%s275]
              %341 = vst [vmem:[%s283 + $0x70] sm:%s275] %v340
              %v342 = vld [vmem:[%s282 + $0xe8] sm:%s275]
              %343 = vst [vmem:[%s283 + $0x74] sm:%s275] %v342
              %v344 = vld [vmem:[%s282 + $0xf0] sm:%s275]
              %345 = vst [vmem:[%s283 + $0x78] sm:%s275] %v344
              %v346 = vld [vmem:[%s282 + $0xf8] sm:%s275]
              %347 = vst [vmem:[%s283 + $0x7c] sm:%s275] %v346
            $region85: #{graph_convolution_bs_forward.4} parent=72 // loop_footer
              %s281 = sadd.s32 1, %s277
            $region86: #{graph_convolution_bs_forward.4} parent=72 // loop_footer_branch
              %276 = sbr.rel target = $region82
            $region87: #{graph_convolution_bs_forward.4} parent=72 // loop_exit
              _
          $region73: #{graph_convolution_bs_forward.4} parent=57 // pred_fallthru
            _
        $region58: #{graph_convolution_bs_forward.4} parent=53 // pred_fallthru
          _
        // Predicated region
        $region59: #{graph_convolution_bs_forward.4} parent=53 // pred_check
          _
        $region60: #{graph_convolution_bs_forward.4} parent=53 // pred_check_branch
          %189 = sbr.rel (0) target = $region62
        $region61: #{graph_convolution_bs_forward.4} parent=53 // pred_region
          %s191 = ssub.s32 16, 1
          loop: start=0, step=1, limit=1
          $region63: #{graph_convolution_bs_forward.4} parent=61 // loop_pre_header
            _
          $region64: #{graph_convolution_bs_forward.4} parent=61 // loop_header
            %s193 = sphi 0, %s197
            %p194 = scmp.ge.s32.totalorder %s193, 1
            %s198 = sphi %s183, %s183
            %s199 = sphi [#allocation3], [#allocation3]
          $region65: #{graph_convolution_bs_forward.4} parent=61 // loop_header_branch
            %196 = sbr.rel (%p194) target = $region69
          $region66: #{graph_convolution_bs_forward.4} parent=61 // loop_body
            %v200 = vld [vmem:[%s198] sm:%s191]
            %201 = vst [vmem:[%s199] sm:%s191] %v200
            %v202 = vld [vmem:[%s198 + $0x8] sm:%s191]
            %203 = vst [vmem:[%s199 + $0x4] sm:%s191] %v202
            %v204 = vld [vmem:[%s198 + $0x10] sm:%s191]
            %205 = vst [vmem:[%s199 + $0x8] sm:%s191] %v204
            %v206 = vld [vmem:[%s198 + $0x18] sm:%s191]
            %207 = vst [vmem:[%s199 + $0xc] sm:%s191] %v206
            %v208 = vld [vmem:[%s198 + $0x20] sm:%s191]
            %209 = vst [vmem:[%s199 + $0x10] sm:%s191] %v208
            %v210 = vld [vmem:[%s198 + $0x28] sm:%s191]
            %211 = vst [vmem:[%s199 + $0x14] sm:%s191] %v210
            %v212 = vld [vmem:[%s198 + $0x30] sm:%s191]
            %213 = vst [vmem:[%s199 + $0x18] sm:%s191] %v212
            %v214 = vld [vmem:[%s198 + $0x38] sm:%s191]
            %215 = vst [vmem:[%s199 + $0x1c] sm:%s191] %v214
            %v216 = vld [vmem:[%s198 + $0x40] sm:%s191]
            %217 = vst [vmem:[%s199 + $0x20] sm:%s191] %v216
            %v218 = vld [vmem:[%s198 + $0x48] sm:%s191]
            %219 = vst [vmem:[%s199 + $0x24] sm:%s191] %v218
            %v220 = vld [vmem:[%s198 + $0x50] sm:%s191]
            %221 = vst [vmem:[%s199 + $0x28] sm:%s191] %v220
            %v222 = vld [vmem:[%s198 + $0x58] sm:%s191]
            %223 = vst [vmem:[%s199 + $0x2c] sm:%s191] %v222
            %v224 = vld [vmem:[%s198 + $0x60] sm:%s191]
            %225 = vst [vmem:[%s199 + $0x30] sm:%s191] %v224
            %v226 = vld [vmem:[%s198 + $0x68] sm:%s191]
            %227 = vst [vmem:[%s199 + $0x34] sm:%s191] %v226
            %v228 = vld [vmem:[%s198 + $0x70] sm:%s191]
            %229 = vst [vmem:[%s199 + $0x38] sm:%s191] %v228
            %v230 = vld [vmem:[%s198 + $0x78] sm:%s191]
            %231 = vst [vmem:[%s199 + $0x3c] sm:%s191] %v230
            %v232 = vld [vmem:[%s198 + $0x80] sm:%s191]
            %233 = vst [vmem:[%s199 + $0x40] sm:%s191] %v232
            %v234 = vld [vmem:[%s198 + $0x88] sm:%s191]
            %235 = vst [vmem:[%s199 + $0x44] sm:%s191] %v234
            %v236 = vld [vmem:[%s198 + $0x90] sm:%s191]
            %237 = vst [vmem:[%s199 + $0x48] sm:%s191] %v236
            %v238 = vld [vmem:[%s198 + $0x98] sm:%s191]
            %239 = vst [vmem:[%s199 + $0x4c] sm:%s191] %v238
            %v240 = vld [vmem:[%s198 + $0xa0] sm:%s191]
            %241 = vst [vmem:[%s199 + $0x50] sm:%s191] %v240
            %v242 = vld [vmem:[%s198 + $0xa8] sm:%s191]
            %243 = vst [vmem:[%s199 + $0x54] sm:%s191] %v242
            %v244 = vld [vmem:[%s198 + $0xb0] sm:%s191]
            %245 = vst [vmem:[%s199 + $0x58] sm:%s191] %v244
            %v246 = vld [vmem:[%s198 + $0xb8] sm:%s191]
            %247 = vst [vmem:[%s199 + $0x5c] sm:%s191] %v246
            %v248 = vld [vmem:[%s198 + $0xc0] sm:%s191]
            %249 = vst [vmem:[%s199 + $0x60] sm:%s191] %v248
            %v250 = vld [vmem:[%s198 + $0xc8] sm:%s191]
            %251 = vst [vmem:[%s199 + $0x64] sm:%s191] %v250
            %v252 = vld [vmem:[%s198 + $0xd0] sm:%s191]
            %253 = vst [vmem:[%s199 + $0x68] sm:%s191] %v252
            %v254 = vld [vmem:[%s198 + $0xd8] sm:%s191]
            %255 = vst [vmem:[%s199 + $0x6c] sm:%s191] %v254
            %v256 = vld [vmem:[%s198 + $0xe0] sm:%s191]
            %257 = vst [vmem:[%s199 + $0x70] sm:%s191] %v256
            %v258 = vld [vmem:[%s198 + $0xe8] sm:%s191]
            %259 = vst [vmem:[%s199 + $0x74] sm:%s191] %v258
            %v260 = vld [vmem:[%s198 + $0xf0] sm:%s191]
            %261 = vst [vmem:[%s199 + $0x78] sm:%s191] %v260
            %v262 = vld [vmem:[%s198 + $0xf8] sm:%s191]
            %263 = vst [vmem:[%s199 + $0x7c] sm:%s191] %v262
          $region67: #{graph_convolution_bs_forward.4} parent=61 // loop_footer
            %s197 = sadd.s32 1, %s193
          $region68: #{graph_convolution_bs_forward.4} parent=61 // loop_footer_branch
            %192 = sbr.rel target = $region64
          $region69: #{graph_convolution_bs_forward.4} parent=61 // loop_exit
            _
        $region62: #{graph_convolution_bs_forward.4} parent=53 // pred_fallthru
          _
      $region54: #{graph_convolution_bs_forward.4} parent=49 // pred_fallthru
        _
      %348 = vnop
    $region50: #{graph_convolution_bs_forward.4} parent=1 // pred_fallthru
      _
    // Predicated region
    $region88: #{graph_convolution_bs_forward.4} parent=1 // pred_check
      _
    $region89: #{graph_convolution_bs_forward.4} parent=1 // pred_check_branch
      %350 = sbr.rel (0) target = $region91
    $region90: #{graph_convolution_bs_forward.4} parent=1 // pred_region
      _
    $region91: #{graph_convolution_bs_forward.4} parent=1 // pred_fallthru
      _
    // Predicated region
    $region92: #{graph_convolution_bs_forward.4} parent=1 // pred_check
      _
    $region93: #{graph_convolution_bs_forward.4} parent=1 // pred_check_branch
      %352 = sbr.rel (0) target = $region95
    $region94: #{graph_convolution_bs_forward.4} parent=1 // pred_region
      _
    $region95: #{graph_convolution_bs_forward.4} parent=1 // pred_fallthru
      _
    %p353 = scmp.eq.s32.totalorder 0, 0
    // Predicated region
    $region96: #{graph_convolution_bs_forward.4} parent=1 // pred_check
      %p354 = pneg %p353
    $region97: #{graph_convolution_bs_forward.4} parent=1 // pred_check_branch
      %356 = sbr.rel (%p354) target = $region99
    $region98: #{graph_convolution_bs_forward.4} parent=1 // pred_region
      %v357 = vld [vmem:[#allocation3] sm:$0xf]
      %v358 = vld [vmem:[#allocation3 + $0x4] sm:$0xf]
      %v359 = vld [vmem:[#allocation3 + $0x8] sm:$0xf]
      %v360 = vld [vmem:[#allocation3 + $0xc] sm:$0xf]
      %v361 = vld [vmem:[#allocation3 + $0x10] sm:$0xf]
      %v362 = vld [vmem:[#allocation3 + $0x14] sm:$0xf]
      %v363 = vld [vmem:[#allocation3 + $0x18] sm:$0xf]
      %v364 = vld [vmem:[#allocation3 + $0x1c] sm:$0xf]
      %v365 = vld [vmem:[#allocation3 + $0x20] sm:$0xf]
      %v366 = vld [vmem:[#allocation3 + $0x24] sm:$0xf]
      %v367 = vld [vmem:[#allocation3 + $0x28] sm:$0xf]
      %v368 = vld [vmem:[#allocation3 + $0x2c] sm:$0xf]
      %v369 = vld [vmem:[#allocation3 + $0x30] sm:$0xf]
      %v370 = vld [vmem:[#allocation3 + $0x34] sm:$0xf]
      %v371 = vld [vmem:[#allocation3 + $0x38] sm:$0xf]
      %v372 = vld [vmem:[#allocation3 + $0x3c] sm:$0xf]
      %v373 = vld [vmem:[#allocation3 + $0x40] sm:$0xf]
      %v374 = vld [vmem:[#allocation3 + $0x44] sm:$0xf]
      %v375 = vld [vmem:[#allocation3 + $0x48] sm:$0xf]
      %v376 = vld [vmem:[#allocation3 + $0x4c] sm:$0xf]
      %v377 = vld [vmem:[#allocation3 + $0x50] sm:$0xf]
      %v378 = vld [vmem:[#allocation3 + $0x54] sm:$0xf]
      %v379 = vld [vmem:[#allocation3 + $0x58] sm:$0xf]
      %v380 = vld [vmem:[#allocation3 + $0x5c] sm:$0xf]
      %v381 = vld [vmem:[#allocation3 + $0x60] sm:$0xf]
      %v382 = vld [vmem:[#allocation3 + $0x64] sm:$0xf]
      %v383 = vld [vmem:[#allocation3 + $0x68] sm:$0xf]
      %v384 = vld [vmem:[#allocation3 + $0x6c] sm:$0xf]
      %v385 = vld [vmem:[#allocation3 + $0x70] sm:$0xf]
      %v386 = vld [vmem:[#allocation3 + $0x74] sm:$0xf]
      %v387 = vld [vmem:[#allocation3 + $0x78] sm:$0xf]
      %v388 = vld [vmem:[#allocation3 + $0x7c] sm:$0xf]
      %v389 = vunpack.c.l.bf16 %v357
      %v390 = vunpack.c.l.bf16 %v358
      %v391 = vunpack.c.l.bf16 %v359
      %v392 = vunpack.c.l.bf16 %v360
      %v393 = vunpack.c.l.bf16 %v361
      %v394 = vunpack.c.l.bf16 %v362
      %v395 = vunpack.c.l.bf16 %v363
      %v396 = vunpack.c.l.bf16 %v364
      %v397 = vunpack.c.l.bf16 %v365
      %v398 = vunpack.c.l.bf16 %v366
      %v399 = vunpack.c.l.bf16 %v367
      %v400 = vunpack.c.l.bf16 %v368
      %v401 = vunpack.c.l.bf16 %v369
      %v402 = vunpack.c.l.bf16 %v370
      %v403 = vunpack.c.l.bf16 %v371
      %v404 = vunpack.c.l.bf16 %v372
      %v405 = vunpack.c.l.bf16 %v373
      %v406 = vunpack.c.l.bf16 %v374
      %v407 = vunpack.c.l.bf16 %v375
      %v408 = vunpack.c.l.bf16 %v376
      %v409 = vunpack.c.l.bf16 %v377
      %v410 = vunpack.c.l.bf16 %v378
      %v411 = vunpack.c.l.bf16 %v379
      %v412 = vunpack.c.l.bf16 %v380
      %v413 = vunpack.c.l.bf16 %v381
      %v414 = vunpack.c.l.bf16 %v382
      %v415 = vunpack.c.l.bf16 %v383
      %v416 = vunpack.c.l.bf16 %v384
      %v417 = vunpack.c.l.bf16 %v385
      %v418 = vunpack.c.l.bf16 %v386
      %v419 = vunpack.c.l.bf16 %v387
      %v420 = vunpack.c.l.bf16 %v388
      %421 = vst [vmem:[#allocation4] sm:$0xff] %v389
      %422 = vst [vmem:[#allocation4 + $0x8] sm:$0xff] %v390
      %423 = vst [vmem:[#allocation4 + $0x10] sm:$0xff] %v391
      %424 = vst [vmem:[#allocation4 + $0x18] sm:$0xff] %v392
      %425 = vst [vmem:[#allocation4 + $0x20] sm:$0xff] %v393
      %426 = vst [vmem:[#allocation4 + $0x28] sm:$0xff] %v394
      %427 = vst [vmem:[#allocation4 + $0x30] sm:$0xff] %v395
      %428 = vst [vmem:[#allocation4 + $0x38] sm:$0xff] %v396
      %429 = vst [vmem:[#allocation4 + $0x40] sm:$0xff] %v397
      %430 = vst [vmem:[#allocation4 + $0x48] sm:$0xff] %v398
      %431 = vst [vmem:[#allocation4 + $0x50] sm:$0xff] %v399
      %432 = vst [vmem:[#allocation4 + $0x58] sm:$0xff] %v400
      %433 = vst [vmem:[#allocation4 + $0x60] sm:$0xff] %v401
      %434 = vst [vmem:[#allocation4 + $0x68] sm:$0xff] %v402
      %435 = vst [vmem:[#allocation4 + $0x70] sm:$0xff] %v403
      %436 = vst [vmem:[#allocation4 + $0x78] sm:$0xff] %v404
      %437 = vst [vmem:[#allocation4 + $0x80] sm:$0xff] %v405
      %438 = vst [vmem:[#allocation4 + $0x88] sm:$0xff] %v406
      %439 = vst [vmem:[#allocation4 + $0x90] sm:$0xff] %v407
      %440 = vst [vmem:[#allocation4 + $0x98] sm:$0xff] %v408
      %441 = vst [vmem:[#allocation4 + $0xa0] sm:$0xff] %v409
      %442 = vst [vmem:[#allocation4 + $0xa8] sm:$0xff] %v410
      %443 = vst [vmem:[#allocation4 + $0xb0] sm:$0xff] %v411
      %444 = vst [vmem:[#allocation4 + $0xb8] sm:$0xff] %v412
      %445 = vst [vmem:[#allocation4 + $0xc0] sm:$0xff] %v413
      %446 = vst [vmem:[#allocation4 + $0xc8] sm:$0xff] %v414
      %447 = vst [vmem:[#allocation4 + $0xd0] sm:$0xff] %v415
      %448 = vst [vmem:[#allocation4 + $0xd8] sm:$0xff] %v416
      %449 = vst [vmem:[#allocation4 + $0xe0] sm:$0xff] %v417
      %450 = vst [vmem:[#allocation4 + $0xe8] sm:$0xff] %v418
      %451 = vst [vmem:[#allocation4 + $0xf0] sm:$0xff] %v419
      %452 = vst [vmem:[#allocation4 + $0xf8] sm:$0xff] %v420
    $region99: #{graph_convolution_bs_forward.4} parent=1 // pred_fallthru
      _
    %s453 = smul.u32 0, 256
    %s454 = sshra.s32 %s453, 3
    %s455 = sand.u32 %s453, 7
    %s456 = smul.addr %s454, 4
    %s457 = scalar_lea.vmem [#allocation2], %s456
    %v458 = vld [vmem:[%s457] sm:$0xf]
    %v459 = vld [vmem:[%s457 + $0x4] sm:$0xf]
    %v460 = vld [vmem:[%s457 + $0x8] sm:$0xf]
    %v461 = vld [vmem:[%s457 + $0xc] sm:$0xf]
    %v462 = vld [vmem:[%s457 + $0x10] sm:$0xf]
    %v463 = vld [vmem:[%s457 + $0x14] sm:$0xf]
    %v464 = vld [vmem:[%s457 + $0x18] sm:$0xf]
    %v465 = vld [vmem:[%s457 + $0x1c] sm:$0xf]
    %v466 = vld [vmem:[%s457 + $0x20] sm:$0xf]
    %v467 = vld [vmem:[%s457 + $0x24] sm:$0xf]
    %v468 = vld [vmem:[%s457 + $0x28] sm:$0xf]
    %v469 = vld [vmem:[%s457 + $0x2c] sm:$0xf]
    %v470 = vld [vmem:[%s457 + $0x30] sm:$0xf]
    %v471 = vld [vmem:[%s457 + $0x34] sm:$0xf]
    %v472 = vld [vmem:[%s457 + $0x38] sm:$0xf]
    %v473 = vld [vmem:[%s457 + $0x3c] sm:$0xf]
    %v474 = vld [vmem:[%s457 + $0x40] sm:$0xf]
    %v475 = vld [vmem:[%s457 + $0x44] sm:$0xf]
    %v476 = vld [vmem:[%s457 + $0x48] sm:$0xf]
    %v477 = vld [vmem:[%s457 + $0x4c] sm:$0xf]
    %v478 = vld [vmem:[%s457 + $0x50] sm:$0xf]
    %v479 = vld [vmem:[%s457 + $0x54] sm:$0xf]
    %v480 = vld [vmem:[%s457 + $0x58] sm:$0xf]
    %v481 = vld [vmem:[%s457 + $0x5c] sm:$0xf]
    %v482 = vld [vmem:[%s457 + $0x60] sm:$0xf]
    %v483 = vld [vmem:[%s457 + $0x64] sm:$0xf]
    %v484 = vld [vmem:[%s457 + $0x68] sm:$0xf]
    %v485 = vld [vmem:[%s457 + $0x6c] sm:$0xf]
    %v486 = vld [vmem:[%s457 + $0x70] sm:$0xf]
    %v487 = vld [vmem:[%s457 + $0x74] sm:$0xf]
    %v488 = vld [vmem:[%s457 + $0x78] sm:$0xf]
    %v489 = vld [vmem:[%s457 + $0x7c] sm:$0xf]
    %v490 = vld [vmem:[#allocation4] sm:$0xff]
    %v491 = vld [vmem:[#allocation4 + $0x8] sm:$0xff]
    %v492 = vld [vmem:[#allocation4 + $0x10] sm:$0xff]
    %v493 = vld [vmem:[#allocation4 + $0x18] sm:$0xff]
    %v494 = vld [vmem:[#allocation4 + $0x20] sm:$0xff]
    %v495 = vld [vmem:[#allocation4 + $0x28] sm:$0xff]
    %v496 = vld [vmem:[#allocation4 + $0x30] sm:$0xff]
    %v497 = vld [vmem:[#allocation4 + $0x38] sm:$0xff]
    %v498 = vld [vmem:[#allocation4 + $0x40] sm:$0xff]
    %v499 = vld [vmem:[#allocation4 + $0x48] sm:$0xff]
    %v500 = vld [vmem:[#allocation4 + $0x50] sm:$0xff]
    %v501 = vld [vmem:[#allocation4 + $0x58] sm:$0xff]
    %v502 = vld [vmem:[#allocation4 + $0x60] sm:$0xff]
    %v503 = vld [vmem:[#allocation4 + $0x68] sm:$0xff]
    %v504 = vld [vmem:[#allocation4 + $0x70] sm:$0xff]
    %v505 = vld [vmem:[#allocation4 + $0x78] sm:$0xff]
    %v506 = vld [vmem:[#allocation4 + $0x80] sm:$0xff]
    %v507 = vld [vmem:[#allocation4 + $0x88] sm:$0xff]
    %v508 = vld [vmem:[#allocation4 + $0x90] sm:$0xff]
    %v509 = vld [vmem:[#allocation4 + $0x98] sm:$0xff]
    %v510 = vld [vmem:[#allocation4 + $0xa0] sm:$0xff]
    %v511 = vld [vmem:[#allocation4 + $0xa8] sm:$0xff]
    %v512 = vld [vmem:[#allocation4 + $0xb0] sm:$0xff]
    %v513 = vld [vmem:[#allocation4 + $0xb8] sm:$0xff]
    %v514 = vld [vmem:[#allocation4 + $0xc0] sm:$0xff]
    %v515 = vld [vmem:[#allocation4 + $0xc8] sm:$0xff]
    %v516 = vld [vmem:[#allocation4 + $0xd0] sm:$0xff]
    %v517 = vld [vmem:[#allocation4 + $0xd8] sm:$0xff]
    %v518 = vld [vmem:[#allocation4 + $0xe0] sm:$0xff]
    %v519 = vld [vmem:[#allocation4 + $0xe8] sm:$0xff]
    %v520 = vld [vmem:[#allocation4 + $0xf0] sm:$0xff]
    %v521 = vld [vmem:[#allocation4 + $0xf8] sm:$0xff]
    %v522 = vld [vmem:[%s0] sm:$0xff]
    %v523 = vld [vmem:[%s0 + $0x8] sm:$0xff]
    %v524 = vld [vmem:[%s0 + $0x10] sm:$0xff]
    %v525 = vld [vmem:[%s0 + $0x18] sm:$0xff]
    %v526 = vld [vmem:[%s0 + $0x20] sm:$0xff]
    %v527 = vld [vmem:[%s0 + $0x28] sm:$0xff]
    %v528 = vld [vmem:[%s0 + $0x30] sm:$0xff]
    %v529 = vld [vmem:[%s0 + $0x38] sm:$0xff]
    %v530 = vld [vmem:[%s0 + $0x40] sm:$0xff]
    %v531 = vld [vmem:[%s0 + $0x48] sm:$0xff]
    %v532 = vld [vmem:[%s0 + $0x50] sm:$0xff]
    %v533 = vld [vmem:[%s0 + $0x58] sm:$0xff]
    %v534 = vld [vmem:[%s0 + $0x60] sm:$0xff]
    %v535 = vld [vmem:[%s0 + $0x68] sm:$0xff]
    %v536 = vld [vmem:[%s0 + $0x70] sm:$0xff]
    %v537 = vld [vmem:[%s0 + $0x78] sm:$0xff]
    %v538 = vld [vmem:[%s0 + $0x80] sm:$0xff]
    %v539 = vld [vmem:[%s0 + $0x88] sm:$0xff]
    %v540 = vld [vmem:[%s0 + $0x90] sm:$0xff]
    %v541 = vld [vmem:[%s0 + $0x98] sm:$0xff]
    %v542 = vld [vmem:[%s0 + $0xa0] sm:$0xff]
    %v543 = vld [vmem:[%s0 + $0xa8] sm:$0xff]
    %v544 = vld [vmem:[%s0 + $0xb0] sm:$0xff]
    %v545 = vld [vmem:[%s0 + $0xb8] sm:$0xff]
    %v546 = vld [vmem:[%s0 + $0xc0] sm:$0xff]
    %v547 = vld [vmem:[%s0 + $0xc8] sm:$0xff]
    %v548 = vld [vmem:[%s0 + $0xd0] sm:$0xff]
    %v549 = vld [vmem:[%s0 + $0xd8] sm:$0xff]
    %v550 = vld [vmem:[%s0 + $0xe0] sm:$0xff]
    %v551 = vld [vmem:[%s0 + $0xe8] sm:$0xff]
    %v552 = vld [vmem:[%s0 + $0xf0] sm:$0xff]
    %v553 = vld [vmem:[%s0 + $0xf8] sm:$0xff]
    %v554 = vld [vmem:[%s0 + $0x100] sm:$0xff]
    %v555 = vld [vmem:[%s0 + $0x108] sm:$0xff]
    %v556 = vld [vmem:[%s0 + $0x110] sm:$0xff]
    %v557 = vld [vmem:[%s0 + $0x118] sm:$0xff]
    %v558 = vld [vmem:[%s0 + $0x120] sm:$0xff]
    %v559 = vld [vmem:[%s0 + $0x128] sm:$0xff]
    %v560 = vld [vmem:[%s0 + $0x130] sm:$0xff]
    %v561 = vld [vmem:[%s0 + $0x138] sm:$0xff]
    %v562 = vld [vmem:[%s0 + $0x140] sm:$0xff]
    %v563 = vld [vmem:[%s0 + $0x148] sm:$0xff]
    %v564 = vld [vmem:[%s0 + $0x150] sm:$0xff]
    %v565 = vld [vmem:[%s0 + $0x158] sm:$0xff]
    %v566 = vld [vmem:[%s0 + $0x160] sm:$0xff]
    %v567 = vld [vmem:[%s0 + $0x168] sm:$0xff]
    %v568 = vld [vmem:[%s0 + $0x170] sm:$0xff]
    %v569 = vld [vmem:[%s0 + $0x178] sm:$0xff]
    %v570 = vld [vmem:[%s0 + $0x180] sm:$0xff]
    %v571 = vld [vmem:[%s0 + $0x188] sm:$0xff]
    %v572 = vld [vmem:[%s0 + $0x190] sm:$0xff]
    %v573 = vld [vmem:[%s0 + $0x198] sm:$0xff]
    %v574 = vld [vmem:[%s0 + $0x1a0] sm:$0xff]
    %v575 = vld [vmem:[%s0 + $0x1a8] sm:$0xff]
    %v576 = vld [vmem:[%s0 + $0x1b0] sm:$0xff]
    %v577 = vld [vmem:[%s0 + $0x1b8] sm:$0xff]
    %v578 = vld [vmem:[%s0 + $0x1c0] sm:$0xff]
    %v579 = vld [vmem:[%s0 + $0x1c8] sm:$0xff]
    %v580 = vld [vmem:[%s0 + $0x1d0] sm:$0xff]
    %v581 = vld [vmem:[%s0 + $0x1d8] sm:$0xff]
    %v582 = vld [vmem:[%s0 + $0x1e0] sm:$0xff]
    %v583 = vld [vmem:[%s0 + $0x1e8] sm:$0xff]
    %v584 = vld [vmem:[%s0 + $0x1f0] sm:$0xff]
    %v585 = vld [vmem:[%s0 + $0x1f8] sm:$0xff]
    %v586 = vpack.c.bf16 %v524, %v522
    %v587 = vpack.c.bf16 %v525, %v523
    %v588 = vpack.c.bf16 %v528, %v526
    %v589 = vpack.c.bf16 %v529, %v527
    %v590 = vpack.c.bf16 %v532, %v530
    %v591 = vpack.c.bf16 %v533, %v531
    %v592 = vpack.c.bf16 %v536, %v534
    %v593 = vpack.c.bf16 %v537, %v535
    %v594 = vpack.c.bf16 %v540, %v538
    %v595 = vpack.c.bf16 %v541, %v539
    %v596 = vpack.c.bf16 %v544, %v542
    %v597 = vpack.c.bf16 %v545, %v543
    %v598 = vpack.c.bf16 %v548, %v546
    %v599 = vpack.c.bf16 %v549, %v547
    %v600 = vpack.c.bf16 %v552, %v550
    %v601 = vpack.c.bf16 %v553, %v551
    %v602 = vpack.c.bf16 %v556, %v554
    %v603 = vpack.c.bf16 %v557, %v555
    %v604 = vpack.c.bf16 %v560, %v558
    %v605 = vpack.c.bf16 %v561, %v559
    %v606 = vpack.c.bf16 %v564, %v562
    %v607 = vpack.c.bf16 %v565, %v563
    %v608 = vpack.c.bf16 %v568, %v566
    %v609 = vpack.c.bf16 %v569, %v567
    %v610 = vpack.c.bf16 %v572, %v570
    %v611 = vpack.c.bf16 %v573, %v571
    %v612 = vpack.c.bf16 %v576, %v574
    %v613 = vpack.c.bf16 %v577, %v575
    %v614 = vpack.c.bf16 %v580, %v578
    %v615 = vpack.c.bf16 %v581, %v579
    %v616 = vpack.c.bf16 %v584, %v582
    %v617 = vpack.c.bf16 %v585, %v583
    %v650 = vunpack.c.l.b16 %v458
    %v651 = vunpack.c.l.b16 %v459
    %v652 = vunpack.c.l.b16 %v460
    %v653 = vunpack.c.l.b16 %v461
    %v654 = vunpack.c.l.b16 %v462
    %v655 = vunpack.c.l.b16 %v463
    %v656 = vunpack.c.l.b16 %v464
    %v657 = vunpack.c.l.b16 %v465
    %v658 = vunpack.c.l.b16 %v466
    %v659 = vunpack.c.l.b16 %v467
    %v660 = vunpack.c.l.b16 %v468
    %v661 = vunpack.c.l.b16 %v469
    %v662 = vunpack.c.l.b16 %v470
    %v663 = vunpack.c.l.b16 %v471
    %v664 = vunpack.c.l.b16 %v472
    %v665 = vunpack.c.l.b16 %v473
    %v666 = vunpack.c.l.b16 %v474
    %v667 = vunpack.c.l.b16 %v475
    %v668 = vunpack.c.l.b16 %v476
    %v669 = vunpack.c.l.b16 %v477
    %v670 = vunpack.c.l.b16 %v478
    %v671 = vunpack.c.l.b16 %v479
    %v672 = vunpack.c.l.b16 %v480
    %v673 = vunpack.c.l.b16 %v481
    %v674 = vunpack.c.l.b16 %v482
    %v675 = vunpack.c.l.b16 %v483
    %v676 = vunpack.c.l.b16 %v484
    %v677 = vunpack.c.l.b16 %v485
    %v678 = vunpack.c.l.b16 %v486
    %v679 = vunpack.c.l.b16 %v487
    %v680 = vunpack.c.l.b16 %v488
    %v681 = vunpack.c.l.b16 %v489
    %v682 = vpack.c.b16 %v651, %v650
    %v683 = vpack.c.b16 %v653, %v652
    %v684 = vpack.c.b16 %v655, %v654
    %v685 = vpack.c.b16 %v657, %v656
    %v686 = vpack.c.b16 %v659, %v658
    %v687 = vpack.c.b16 %v661, %v660
    %v688 = vpack.c.b16 %v663, %v662
    %v689 = vpack.c.b16 %v665, %v664
    %v690 = vpack.c.b16 %v667, %v666
    %v691 = vpack.c.b16 %v669, %v668
    %v692 = vpack.c.b16 %v671, %v670
    %v693 = vpack.c.b16 %v673, %v672
    %v694 = vpack.c.b16 %v675, %v674
    %v695 = vpack.c.b16 %v677, %v676
    %v696 = vpack.c.b16 %v679, %v678
    %v697 = vpack.c.b16 %v681, %v680
    %714 = vmatpush.bf16.msra.mxu0 %v689
    %715 = vmatpush.bf16.msra.mxu0 %v688
    %716 = vmatpush.bf16.msra.mxu0 %v687
    %717 = vmatpush.bf16.msra.mxu0 %v686
    %718 = vmatpush.bf16.msra.mxu0 %v685
    %719 = vmatpush.bf16.msra.mxu0 %v684
    %720 = vmatpush.bf16.msra.mxu0 %v683
    %721 = vmatpush.bf16.msra.mxu0 %v682
    %722 = vmatmul.bf16.gmra.mxu0 %v586
    %v723 = vpop.f32.mrf.mxu0
    %v724 = vadd.f32 0.0, %v723
    %v725 = vpop.f32.mrf.mxu0
    %v726 = vadd.f32 0.0, %v725
    %727 = vmatmul.bf16.gmra.mxu0 %v588
    %v728 = vpop.f32.mrf.mxu0
    %v729 = vadd.f32 0.0, %v728
    %v730 = vpop.f32.mrf.mxu0
    %v731 = vadd.f32 0.0, %v730
    %732 = vmatmul.bf16.gmra.mxu0 %v590
    %v733 = vpop.f32.mrf.mxu0
    %v734 = vadd.f32 0.0, %v733
    %v735 = vpop.f32.mrf.mxu0
    %v736 = vadd.f32 0.0, %v735
    %737 = vmatmul.bf16.gmra.mxu0 %v592
    %v738 = vpop.f32.mrf.mxu0
    %v739 = vadd.f32 0.0, %v738
    %v740 = vpop.f32.mrf.mxu0
    %v741 = vadd.f32 0.0, %v740
    %742 = vmatmul.bf16.gmra.mxu0 %v594
    %v743 = vpop.f32.mrf.mxu0
    %v744 = vadd.f32 0.0, %v743
    %v745 = vpop.f32.mrf.mxu0
    %v746 = vadd.f32 0.0, %v745
    %747 = vmatmul.bf16.gmra.mxu0 %v596
    %v748 = vpop.f32.mrf.mxu0
    %v749 = vadd.f32 0.0, %v748
    %v750 = vpop.f32.mrf.mxu0
    %v751 = vadd.f32 0.0, %v750
    %752 = vmatmul.bf16.gmra.mxu0 %v598
    %v753 = vpop.f32.mrf.mxu0
    %v754 = vadd.f32 0.0, %v753
    %v755 = vpop.f32.mrf.mxu0
    %v756 = vadd.f32 0.0, %v755
    %757 = vmatmul.bf16.gmra.mxu0 %v600
    %v758 = vpop.f32.mrf.mxu0
    %v759 = vadd.f32 0.0, %v758
    %v760 = vpop.f32.mrf.mxu0
    %v761 = vadd.f32 0.0, %v760
    %762 = vmatmul.bf16.gmra.mxu0 %v602
    %v763 = vpop.f32.mrf.mxu0
    %v764 = vadd.f32 0.0, %v763
    %v765 = vpop.f32.mrf.mxu0
    %v766 = vadd.f32 0.0, %v765
    %767 = vmatmul.bf16.gmra.mxu0 %v604
    %v768 = vpop.f32.mrf.mxu0
    %v769 = vadd.f32 0.0, %v768
    %v770 = vpop.f32.mrf.mxu0
    %v771 = vadd.f32 0.0, %v770
    %772 = vmatmul.bf16.gmra.mxu0 %v606
    %v773 = vpop.f32.mrf.mxu0
    %v774 = vadd.f32 0.0, %v773
    %v775 = vpop.f32.mrf.mxu0
    %v776 = vadd.f32 0.0, %v775
    %777 = vmatmul.bf16.gmra.mxu0 %v608
    %v778 = vpop.f32.mrf.mxu0
    %v779 = vadd.f32 0.0, %v778
    %v780 = vpop.f32.mrf.mxu0
    %v781 = vadd.f32 0.0, %v780
    %782 = vmatmul.bf16.gmra.mxu0 %v610
    %v783 = vpop.f32.mrf.mxu0
    %v784 = vadd.f32 0.0, %v783
    %v785 = vpop.f32.mrf.mxu0
    %v786 = vadd.f32 0.0, %v785
    %787 = vmatmul.bf16.gmra.mxu0 %v612
    %v788 = vpop.f32.mrf.mxu0
    %v789 = vadd.f32 0.0, %v788
    %v790 = vpop.f32.mrf.mxu0
    %v791 = vadd.f32 0.0, %v790
    %792 = vmatmul.bf16.gmra.mxu0 %v614
    %v793 = vpop.f32.mrf.mxu0
    %v794 = vadd.f32 0.0, %v793
    %v795 = vpop.f32.mrf.mxu0
    %v796 = vadd.f32 0.0, %v795
    %797 = vmatmul.bf16.gmra.mxu0 %v616
    %v798 = vpop.f32.mrf.mxu0
    %v799 = vadd.f32 0.0, %v798
    %v800 = vpop.f32.mrf.mxu0
    %v801 = vadd.f32 0.0, %v800
    %802 = vdwg.mxu0
    %803 = vmatpush.bf16.msra.mxu0 %v697
    %804 = vmatpush.bf16.msra.mxu0 %v696
    %805 = vmatpush.bf16.msra.mxu0 %v695
    %806 = vmatpush.bf16.msra.mxu0 %v694
    %807 = vmatpush.bf16.msra.mxu0 %v693
    %808 = vmatpush.bf16.msra.mxu0 %v692
    %809 = vmatpush.bf16.msra.mxu0 %v691
    %810 = vmatpush.bf16.msra.mxu0 %v690
    %811 = vmatmul.bf16.gmra.mxu0 %v587
    %v812 = vpop.f32.mrf.mxu0
    %v813 = vadd.f32 %v724, %v812
    %v814 = vpop.f32.mrf.mxu0
    %v815 = vadd.f32 %v726, %v814
    %816 = vmatmul.bf16.gmra.mxu0 %v589
    %v817 = vpop.f32.mrf.mxu0
    %v818 = vadd.f32 %v729, %v817
    %v819 = vpop.f32.mrf.mxu0
    %v820 = vadd.f32 %v731, %v819
    %821 = vmatmul.bf16.gmra.mxu0 %v591
    %v822 = vpop.f32.mrf.mxu0
    %v823 = vadd.f32 %v734, %v822
    %v824 = vpop.f32.mrf.mxu0
    %v825 = vadd.f32 %v736, %v824
    %826 = vmatmul.bf16.gmra.mxu0 %v593
    %v827 = vpop.f32.mrf.mxu0
    %v828 = vadd.f32 %v739, %v827
    %v829 = vpop.f32.mrf.mxu0
    %v830 = vadd.f32 %v741, %v829
    %831 = vmatmul.bf16.gmra.mxu0 %v595
    %v832 = vpop.f32.mrf.mxu0
    %v833 = vadd.f32 %v744, %v832
    %v834 = vpop.f32.mrf.mxu0
    %v835 = vadd.f32 %v746, %v834
    %836 = vmatmul.bf16.gmra.mxu0 %v597
    %v837 = vpop.f32.mrf.mxu0
    %v838 = vadd.f32 %v749, %v837
    %v839 = vpop.f32.mrf.mxu0
    %v840 = vadd.f32 %v751, %v839
    %841 = vmatmul.bf16.gmra.mxu0 %v599
    %v842 = vpop.f32.mrf.mxu0
    %v843 = vadd.f32 %v754, %v842
    %v844 = vpop.f32.mrf.mxu0
    %v845 = vadd.f32 %v756, %v844
    %846 = vmatmul.bf16.gmra.mxu0 %v601
    %v847 = vpop.f32.mrf.mxu0
    %v848 = vadd.f32 %v759, %v847
    %v849 = vpop.f32.mrf.mxu0
    %v850 = vadd.f32 %v761, %v849
    %851 = vmatmul.bf16.gmra.mxu0 %v603
    %v852 = vpop.f32.mrf.mxu0
    %v853 = vadd.f32 %v764, %v852
    %v854 = vpop.f32.mrf.mxu0
    %v855 = vadd.f32 %v766, %v854
    %856 = vmatmul.bf16.gmra.mxu0 %v605
    %v857 = vpop.f32.mrf.mxu0
    %v858 = vadd.f32 %v769, %v857
    %v859 = vpop.f32.mrf.mxu0
    %v860 = vadd.f32 %v771, %v859
    %861 = vmatmul.bf16.gmra.mxu0 %v607
    %v862 = vpop.f32.mrf.mxu0
    %v863 = vadd.f32 %v774, %v862
    %v864 = vpop.f32.mrf.mxu0
    %v865 = vadd.f32 %v776, %v864
    %866 = vmatmul.bf16.gmra.mxu0 %v609
    %v867 = vpop.f32.mrf.mxu0
    %v868 = vadd.f32 %v779, %v867
    %v869 = vpop.f32.mrf.mxu0
    %v870 = vadd.f32 %v781, %v869
    %871 = vmatmul.bf16.gmra.mxu0 %v611
    %v872 = vpop.f32.mrf.mxu0
    %v873 = vadd.f32 %v784, %v872
    %v874 = vpop.f32.mrf.mxu0
    %v875 = vadd.f32 %v786, %v874
    %876 = vmatmul.bf16.gmra.mxu0 %v613
    %v877 = vpop.f32.mrf.mxu0
    %v878 = vadd.f32 %v789, %v877
    %v879 = vpop.f32.mrf.mxu0
    %v880 = vadd.f32 %v791, %v879
    %881 = vmatmul.bf16.gmra.mxu0 %v615
    %v882 = vpop.f32.mrf.mxu0
    %v883 = vadd.f32 %v794, %v882
    %v884 = vpop.f32.mrf.mxu0
    %v885 = vadd.f32 %v796, %v884
    %886 = vmatmul.bf16.gmra.mxu0 %v617
    %v887 = vpop.f32.mrf.mxu0
    %v888 = vadd.f32 %v799, %v887
    %v889 = vpop.f32.mrf.mxu0
    %v890 = vadd.f32 %v801, %v889
    %891 = vdwg.mxu0
    %v892 = vadd.f32 %v490, %v813
    %v893 = vadd.f32 %v491, %v815
    %v894 = vadd.f32 %v492, %v818
    %v895 = vadd.f32 %v493, %v820
    %v896 = vadd.f32 %v494, %v823
    %v897 = vadd.f32 %v495, %v825
    %v898 = vadd.f32 %v496, %v828
    %v899 = vadd.f32 %v497, %v830
    %v900 = vadd.f32 %v498, %v833
    %v901 = vadd.f32 %v499, %v835
    %v902 = vadd.f32 %v500, %v838
    %v903 = vadd.f32 %v501, %v840
    %v904 = vadd.f32 %v502, %v843
    %v905 = vadd.f32 %v503, %v845
    %v906 = vadd.f32 %v504, %v848
    %v907 = vadd.f32 %v505, %v850
    %v908 = vadd.f32 %v506, %v853
    %v909 = vadd.f32 %v507, %v855
    %v910 = vadd.f32 %v508, %v858
    %v911 = vadd.f32 %v509, %v860
    %v912 = vadd.f32 %v510, %v863
    %v913 = vadd.f32 %v511, %v865
    %v914 = vadd.f32 %v512, %v868
    %v915 = vadd.f32 %v513, %v870
    %v916 = vadd.f32 %v514, %v873
    %v917 = vadd.f32 %v515, %v875
    %v918 = vadd.f32 %v516, %v878
    %v919 = vadd.f32 %v517, %v880
    %v920 = vadd.f32 %v518, %v883
    %v921 = vadd.f32 %v519, %v885
    %v922 = vadd.f32 %v520, %v888
    %v923 = vadd.f32 %v521, %v890
    %924 = vst [vmem:[#allocation4] sm:$0xff] %v892
    %925 = vst [vmem:[#allocation4 + $0x8] sm:$0xff] %v893
    %926 = vst [vmem:[#allocation4 + $0x10] sm:$0xff] %v894
    %927 = vst [vmem:[#allocation4 + $0x18] sm:$0xff] %v895
    %928 = vst [vmem:[#allocation4 + $0x20] sm:$0xff] %v896
    %929 = vst [vmem:[#allocation4 + $0x28] sm:$0xff] %v897
    %930 = vst [vmem:[#allocation4 + $0x30] sm:$0xff] %v898
    %931 = vst [vmem:[#allocation4 + $0x38] sm:$0xff] %v899
    %932 = vst [vmem:[#allocation4 + $0x40] sm:$0xff] %v900
    %933 = vst [vmem:[#allocation4 + $0x48] sm:$0xff] %v901
    %934 = vst [vmem:[#allocation4 + $0x50] sm:$0xff] %v902
    %935 = vst [vmem:[#allocation4 + $0x58] sm:$0xff] %v903
    %936 = vst [vmem:[#allocation4 + $0x60] sm:$0xff] %v904
    %937 = vst [vmem:[#allocation4 + $0x68] sm:$0xff] %v905
    %938 = vst [vmem:[#allocation4 + $0x70] sm:$0xff] %v906
    %939 = vst [vmem:[#allocation4 + $0x78] sm:$0xff] %v907
    %940 = vst [vmem:[#allocation4 + $0x80] sm:$0xff] %v908
    %941 = vst [vmem:[#allocation4 + $0x88] sm:$0xff] %v909
    %942 = vst [vmem:[#allocation4 + $0x90] sm:$0xff] %v910
    %943 = vst [vmem:[#allocation4 + $0x98] sm:$0xff] %v911
    %944 = vst [vmem:[#allocation4 + $0xa0] sm:$0xff] %v912
    %945 = vst [vmem:[#allocation4 + $0xa8] sm:$0xff] %v913
    %946 = vst [vmem:[#allocation4 + $0xb0] sm:$0xff] %v914
    %947 = vst [vmem:[#allocation4 + $0xb8] sm:$0xff] %v915
    %948 = vst [vmem:[#allocation4 + $0xc0] sm:$0xff] %v916
    %949 = vst [vmem:[#allocation4 + $0xc8] sm:$0xff] %v917
    %950 = vst [vmem:[#allocation4 + $0xd0] sm:$0xff] %v918
    %951 = vst [vmem:[#allocation4 + $0xd8] sm:$0xff] %v919
    %952 = vst [vmem:[#allocation4 + $0xe0] sm:$0xff] %v920
    %953 = vst [vmem:[#allocation4 + $0xe8] sm:$0xff] %v921
    %954 = vst [vmem:[#allocation4 + $0xf0] sm:$0xff] %v922
    %955 = vst [vmem:[#allocation4 + $0xf8] sm:$0xff] %v923
    // Predicated region
    $region100: #{graph_convolution_bs_forward.4} parent=1 // pred_check
      %p956 = pneg %p353
    $region101: #{graph_convolution_bs_forward.4} parent=1 // pred_check_branch
      %958 = sbr.rel (%p956) target = $region103
    $region102: #{graph_convolution_bs_forward.4} parent=1 // pred_region
      %v959 = vld [vmem:[#allocation4] sm:$0xff]
      %v960 = vld [vmem:[#allocation4 + $0x8] sm:$0xff]
      %v961 = vld [vmem:[#allocation4 + $0x10] sm:$0xff]
      %v962 = vld [vmem:[#allocation4 + $0x18] sm:$0xff]
      %v963 = vld [vmem:[#allocation4 + $0x20] sm:$0xff]
      %v964 = vld [vmem:[#allocation4 + $0x28] sm:$0xff]
      %v965 = vld [vmem:[#allocation4 + $0x30] sm:$0xff]
      %v966 = vld [vmem:[#allocation4 + $0x38] sm:$0xff]
      %v967 = vld [vmem:[#allocation4 + $0x40] sm:$0xff]
      %v968 = vld [vmem:[#allocation4 + $0x48] sm:$0xff]
      %v969 = vld [vmem:[#allocation4 + $0x50] sm:$0xff]
      %v970 = vld [vmem:[#allocation4 + $0x58] sm:$0xff]
      %v971 = vld [vmem:[#allocation4 + $0x60] sm:$0xff]
      %v972 = vld [vmem:[#allocation4 + $0x68] sm:$0xff]
      %v973 = vld [vmem:[#allocation4 + $0x70] sm:$0xff]
      %v974 = vld [vmem:[#allocation4 + $0x78] sm:$0xff]
      %v975 = vld [vmem:[#allocation4 + $0x80] sm:$0xff]
      %v976 = vld [vmem:[#allocation4 + $0x88] sm:$0xff]
      %v977 = vld [vmem:[#allocation4 + $0x90] sm:$0xff]
      %v978 = vld [vmem:[#allocation4 + $0x98] sm:$0xff]
      %v979 = vld [vmem:[#allocation4 + $0xa0] sm:$0xff]
      %v980 = vld [vmem:[#allocation4 + $0xa8] sm:$0xff]
      %v981 = vld [vmem:[#allocation4 + $0xb0] sm:$0xff]
      %v982 = vld [vmem:[#allocation4 + $0xb8] sm:$0xff]
      %v983 = vld [vmem:[#allocation4 + $0xc0] sm:$0xff]
      %v984 = vld [vmem:[#allocation4 + $0xc8] sm:$0xff]
      %v985 = vld [vmem:[#allocation4 + $0xd0] sm:$0xff]
      %v986 = vld [vmem:[#allocation4 + $0xd8] sm:$0xff]
      %v987 = vld [vmem:[#allocation4 + $0xe0] sm:$0xff]
      %v988 = vld [vmem:[#allocation4 + $0xe8] sm:$0xff]
      %v989 = vld [vmem:[#allocation4 + $0xf0] sm:$0xff]
      %v990 = vld [vmem:[#allocation4 + $0xf8] sm:$0xff]
      %v991 = vadd.f32 %v959, %v960
      %v992 = vadd.f32 %v991, %v961
      %v993 = vadd.f32 %v992, %v962
      %v994 = vadd.f32 %v993, %v963
      %v995 = vadd.f32 %v994, %v964
      %v996 = vadd.f32 %v995, %v965
      %v997 = vadd.f32 %v996, %v966
      %v998 = vadd.f32 %v997, %v967
      %v999 = vadd.f32 %v998, %v968
      %v1000 = vadd.f32 %v999, %v969
      %v1001 = vadd.f32 %v1000, %v970
      %v1002 = vadd.f32 %v1001, %v971
      %v1003 = vadd.f32 %v1002, %v972
      %v1004 = vadd.f32 %v1003, %v973
      %v1005 = vadd.f32 %v1004, %v974
      %v1006 = vadd.f32 %v1005, %v975
      %v1007 = vadd.f32 %v1006, %v976
      %v1008 = vadd.f32 %v1007, %v977
      %v1009 = vadd.f32 %v1008, %v978
      %v1010 = vadd.f32 %v1009, %v979
      %v1011 = vadd.f32 %v1010, %v980
      %v1012 = vadd.f32 %v1011, %v981
      %v1013 = vadd.f32 %v1012, %v982
      %v1014 = vadd.f32 %v1013, %v983
      %v1015 = vadd.f32 %v1014, %v984
      %v1016 = vadd.f32 %v1015, %v985
      %v1017 = vadd.f32 %v1016, %v986
      %v1018 = vadd.f32 %v1017, %v987
      %v1019 = vadd.f32 %v1018, %v988
      %v1020 = vadd.f32 %v1019, %v989
      %v1021 = vadd.f32 %v1020, %v990
      %v1022 = vrot.slane %v1021, 4
      %v1023 = vadd.f32 %v1021, %v1022
      %v1024 = vrot.slane %v1023, 2
      %v1025 = vadd.f32 %v1023, %v1024
      %v1026 = vrot.slane %v1025, 1
      %v1027 = vadd.f32 %v1025, %v1026
      %1028 = vst [vmem:[%s4] sm:$0x1] %v1027
      %v1029 = vmul.f32 %v959, %v959
      %v1030 = vmul.f32 %v960, %v960
      %v1031 = vmul.f32 %v961, %v961
      %v1032 = vmul.f32 %v962, %v962
      %v1033 = vmul.f32 %v963, %v963
      %v1034 = vmul.f32 %v964, %v964
      %v1035 = vmul.f32 %v965, %v965
      %v1036 = vmul.f32 %v966, %v966
      %v1037 = vmul.f32 %v967, %v967
      %v1038 = vmul.f32 %v968, %v968
      %v1039 = vmul.f32 %v969, %v969
      %v1040 = vmul.f32 %v970, %v970
      %v1041 = vmul.f32 %v971, %v971
      %v1042 = vmul.f32 %v972, %v972
      %v1043 = vmul.f32 %v973, %v973
      %v1044 = vmul.f32 %v974, %v974
      %v1045 = vmul.f32 %v975, %v975
      %v1046 = vmul.f32 %v976, %v976
      %v1047 = vmul.f32 %v977, %v977
      %v1048 = vmul.f32 %v978, %v978
      %v1049 = vmul.f32 %v979, %v979
      %v1050 = vmul.f32 %v980, %v980
      %v1051 = vmul.f32 %v981, %v981
      %v1052 = vmul.f32 %v982, %v982
      %v1053 = vmul.f32 %v983, %v983
      %v1054 = vmul.f32 %v984, %v984
      %v1055 = vmul.f32 %v985, %v985
      %v1056 = vmul.f32 %v986, %v986
      %v1057 = vmul.f32 %v987, %v987
      %v1058 = vmul.f32 %v988, %v988
      %v1059 = vmul.f32 %v989, %v989
      %v1060 = vmul.f32 %v990, %v990
      %v1061 = vadd.f32 %v1029, %v1030
      %v1062 = vadd.f32 %v1061, %v1031
      %v1063 = vadd.f32 %v1062, %v1032
      %v1064 = vadd.f32 %v1063, %v1033
      %v1065 = vadd.f32 %v1064, %v1034
      %v1066 = vadd.f32 %v1065, %v1035
      %v1067 = vadd.f32 %v1066, %v1036
      %v1068 = vadd.f32 %v1067, %v1037
      %v1069 = vadd.f32 %v1068, %v1038
      %v1070 = vadd.f32 %v1069, %v1039
      %v1071 = vadd.f32 %v1070, %v1040
      %v1072 = vadd.f32 %v1071, %v1041
      %v1073 = vadd.f32 %v1072, %v1042
      %v1074 = vadd.f32 %v1073, %v1043
      %v1075 = vadd.f32 %v1074, %v1044
      %v1076 = vadd.f32 %v1075, %v1045
      %v1077 = vadd.f32 %v1076, %v1046
      %v1078 = vadd.f32 %v1077, %v1047
      %v1079 = vadd.f32 %v1078, %v1048
      %v1080 = vadd.f32 %v1079, %v1049
      %v1081 = vadd.f32 %v1080, %v1050
      %v1082 = vadd.f32 %v1081, %v1051
      %v1083 = vadd.f32 %v1082, %v1052
      %v1084 = vadd.f32 %v1083, %v1053
      %v1085 = vadd.f32 %v1084, %v1054
      %v1086 = vadd.f32 %v1085, %v1055
      %v1087 = vadd.f32 %v1086, %v1056
      %v1088 = vadd.f32 %v1087, %v1057
      %v1089 = vadd.f32 %v1088, %v1058
      %v1090 = vadd.f32 %v1089, %v1059
      %v1091 = vadd.f32 %v1090, %v1060
      %v1092 = vrot.slane %v1091, 4
      %v1093 = vadd.f32 %v1091, %v1092
      %v1094 = vrot.slane %v1093, 2
      %v1095 = vadd.f32 %v1093, %v1094
      %v1096 = vrot.slane %v1095, 1
      %v1097 = vadd.f32 %v1095, %v1096
      %1098 = vst [vmem:[%s5] sm:$0x1] %v1097
    $region103: #{graph_convolution_bs_forward.4} parent=1 // pred_fallthru
      _
    // Predicated region
    $region104: #{graph_convolution_bs_forward.4} parent=1 // pred_check
      _
    $region105: #{graph_convolution_bs_forward.4} parent=1 // pred_check_branch
      %1100 = sbr.rel (0) target = $region107
    $region106: #{graph_convolution_bs_forward.4} parent=1 // pred_region
      %1102 = vsyncadd [#allocation5], 0
      %s1103 = sshll.u32 [#allocation4], 4
      %s1104 = int_to_ptr.vmem [resolvable:$true] %s1103
      %s1105 = sshll.u32 %s3, 4
      %s1106 = int_to_ptr.hbm [resolvable:$true] %s1105
      %1111 = dma.vmem_to_hbm [thread:$0]  %s1104, 4096, %s1106, [#allocation5], 128, 128, 8
    $region107: #{graph_convolution_bs_forward.4} parent=1 // pred_fallthru
      _
    // Predicated region
    $region108: #{graph_convolution_bs_forward.4} parent=1 // pred_check
      _
    $region109: #{graph_convolution_bs_forward.4} parent=1 // pred_check_branch
      %1113 = sbr.rel (0) target = $region111
    $region110: #{graph_convolution_bs_forward.4} parent=1 // pred_region
      _
    $region111: #{graph_convolution_bs_forward.4} parent=1 // pred_fallthru
      _
    // Predicated region
    $region112: #{graph_convolution_bs_forward.4} parent=1 // pred_check
      _
    $region113: #{graph_convolution_bs_forward.4} parent=1 // pred_check_branch
      %1115 = sbr.rel (0) target = $region115
    $region114: #{graph_convolution_bs_forward.4} parent=1 // pred_region
      _
    $region115: #{graph_convolution_bs_forward.4} parent=1 // pred_fallthru
      _
    // Predicated region
    $region116: #{graph_convolution_bs_forward.4} parent=1 // pred_check
      _
    $region117: #{graph_convolution_bs_forward.4} parent=1 // pred_check_branch
      %1117 = sbr.rel (0) target = $region119
    $region118: #{graph_convolution_bs_forward.4} parent=1 // pred_region
      %1119 = dma.done [#allocation5], 4096
    $region119: #{graph_convolution_bs_forward.4} parent=1 // pred_fallthru
      _
    // Predicated region
    $region120: #{graph_convolution_bs_forward.4} parent=1 // pred_check
      _
    $region121: #{graph_convolution_bs_forward.4} parent=1 // pred_check_branch
      %1121 = sbr.rel (0) target = $region123
    $region122: #{graph_convolution_bs_forward.4} parent=1 // pred_region
      _
    $region123: #{graph_convolution_bs_forward.4} parent=1 // pred_fallthru
      _
    // Predicated region
    $region124: #{graph_convolution_bs_forward.4} parent=1 // pred_check
      _
    $region125: #{graph_convolution_bs_forward.4} parent=1 // pred_check_branch
      %1123 = sbr.rel (0) target = $region127
    $region126: #{graph_convolution_bs_forward.4} parent=1 // pred_region
      _
    $region127: #{graph_convolution_bs_forward.4} parent=1 // pred_fallthru
      _
    %1124 = vsyncpa [#allocation5], 1

</llo_original>
